<compile_context>
chip_gen: v7x
topology: tpu7x:2x2x1
jax: 0.10.0
libtpu: 0.0.40
codegen_flags: <defaults>
</compile_context>

<pallas_src>
import functools

import jax
import jax.numpy as jnp
from jax.experimental import pallas as pl
from jax.experimental.pallas import tpu as pltpu

# Synthetic "helper" constants (the real module imports these from helper.py and reads
# per-category attribute index files from disk).
NUM_CATEGORY_CLASSES = 8        # helper.Num_category_classes
NUM_ATTRIBUTE_CLASSES = 16      # helper.Num_attribute_classes_general
WEIGHT_INITIALISATION = 0.5     # helper.weight_intialisation
WEIGHT_ADJUSTMENT = 0.1         # helper.weight_adjustment
FEAT_DIM = 512                  # resnet feature dim (linear1: 512 -> 512)
HEAD_PAD = 128                  # fused + lane-padded head width (8 cat + 16 attr + zeros)


def _finetune_kernel(x_ref, cw_ref, cb_ref, w1_ref, b1_ref, wh_ref, bh_ref,
                     out_ref, acc_ref, *, b_tile, m_chunk):
    """Fused: features (1x1 conv + relu + GAP) -> linear1 -> fused pruned heads.

    Grid: (batch tiles [parallel], spatial tiles [arbitrary / reduction]).
    acc_ref: (b_tile, FEAT_DIM) f32 running spatial sum of post-ReLU conv activations.
    """
    s_idx = pl.program_id(1)
    feat = acc_ref.shape[1]

    @pl.when(s_idx == 0)
    def _init():
        acc_ref[...] = jnp.zeros_like(acc_ref)

    cw = cw_ref[...]                               # (C, D) bf16, canonical (K, N) rhs
    cb = cb_ref[...]                               # (1, D) f32
    s_tile = x_ref.shape[2]
    n_chunks = s_tile // m_chunk                   # static

    def conv_relu_sum(xc_f32):
        # xc: (C, m_chunk) f32 -> sum over the chunk's spatial rows of relu(x^T W + b).
        # lhs contracts its dim 0 (C <= 8); any relayout is C*m_chunk elements — tiny
        # next to the m_chunk*512 bias/ReLU/reduce work (review item: bounded, accepted).
        conv = jax.lax.dot_general(
            xc_f32.astype(jnp.bfloat16), cw,
            dimension_numbers=(((0,), (0,)), ((), ())),
            preferred_element_type=jnp.float32)    # (m_chunk, D) f32
        return jnp.sum(jnp.maximum(conv + cb, 0.0), axis=0, keepdims=True)

    partials = []
    for b in range(b_tile):                        # small static unroll over the batch tile
        if n_chunks <= 4:
            part = jnp.zeros((1, feat), jnp.float32)
            for c in range(n_chunks):              # static chunk starts
                part = part + conv_relu_sum(x_ref[b, :, pl.ds(c * m_chunk, m_chunk)])
        else:
            def chunk_body(c, p):
                start = pl.multiple_of(c * m_chunk, m_chunk)
                return p + conv_relu_sum(x_ref[b, :, pl.ds(start, m_chunk)])
            part = jax.lax.fori_loop(0, n_chunks, chunk_body,
                                     jnp.zeros((1, feat), jnp.float32))
        partials.append(part)

    # Single batched accumulator update per grid step (no per-row RMW).
    acc_ref[...] = acc_ref[...] + jnp.concatenate(partials, axis=0)

    @pl.when(s_idx == pl.num_programs(1) - 1)
    def _finalize():
        f = acc_ref[...]                            # (b_tile, D) f32; 1/S folded into w1
        # hrelu_linear2 = relu(linear1(f).clamp(min=0)) == relu(linear1(f))
        h = jnp.dot(f.astype(jnp.bfloat16), w1_ref[...],
                    preferred_element_type=jnp.float32) + b1_ref[...]
        h = jnp.maximum(h, 0.0)                     # (b_tile, D) f32
        # Fused heads: [generalCategories | pruned generalAttributes | zero pad]
        heads = jnp.dot(h.astype(jnp.bfloat16), wh_ref[...],
                        preferred_element_type=jnp.float32) + bh_ref[...]
        heads = jnp.maximum(heads, 0.0)             # torch applies relu to both head outputs
        out_ref[...] = heads[:, None, :]            # (b_tile, 1, HEAD_PAD)


def _pruned_attr_weight(w_attr, lst_indices, attr, attr2):
    """Dynamic pruning of generalAttributesLinear.weight (rows = attribute classes)."""
    counters = jnp.arange(NUM_ATTRIBUTE_CLASSES, dtype=jnp.int32)
    in_list = jnp.isin(counters, jnp.asarray(lst_indices, dtype=jnp.int32))
    is_sel = (counters == attr) | (counters == attr2)
    return jnp.where(
        ~in_list[:, None],
        jnp.zeros_like(w_attr),
        jnp.where(is_sel[:, None],
                  w_attr + WEIGHT_ADJUSTMENT,
                  jnp.full_like(w_attr, WEIGHT_INITIALISATION)))


def _vmem_limit_bytes():
    # ~half of physical VMEM, capped at 64 MiB: 64 MiB on v5e/v6e (128 MiB parts),
    # 32 MiB on v7x (64 MiB part).  Fallback is safe on all generations.
    try:
        cap = int(pltpu.get_tpu_info().vmem_capacity_bytes)
    except Exception:
        cap = 64 * 1024 * 1024
    return min(64 * 1024 * 1024, max(16 * 1024 * 1024, cap // 2))


def finetune_forward(x_nchw, params, category_item, attribute_item, attribute2_item,
                     category_attribute_map):
    """Mirrors FineTuneModel.forward for the 'resnet' arch."""
    # TODO(synk): original code reads the category->attribute-index mapping from files on
    # disk; here it is an in-memory dict of python int lists.
    lst_indices = sorted(int(i) for i in category_attribute_map[int(category_item)])
    attr, attr2 = int(attribute_item), int(attribute2_item)
    w_attr_mod = _pruned_attr_weight(params["w_attr"], lst_indices, attr, attr2)

    B, C, H, W = x_nchw.shape
    S = H * W
    inv_s = 1.0 / float(S)

    # x: NCHW -> (B, C, S) is a pure reshape; NO pad, NO cast (kernel casts per chunk).
    x = x_nchw.reshape(B, C, S)

    # Weights: conv_w already (in, out); linear1/heads transposed to (in, out) so all
    # finalize matmuls are canonical.  GAP 1/S folded into linear1.
    conv_w = params["conv_w"].astype(jnp.bfloat16)                       # (C, D)
    conv_b = params["conv_b"].reshape(1, FEAT_DIM).astype(jnp.float32)
    w1_t = (params["w1"].T * inv_s).astype(jnp.bfloat16)                 # (D, D)
    b1 = params["b1"].reshape(1, FEAT_DIM).astype(jnp.float32)

    n_heads = NUM_CATEGORY_CLASSES + NUM_ATTRIBUTE_CLASSES
    w_heads = jnp.concatenate([params["w_cat"], w_attr_mod], axis=0)     # (24, D)
    w_heads_t = jnp.pad(w_heads, ((0, HEAD_PAD - n_heads), (0, 0))).T.astype(jnp.bfloat16)
    b_heads = jnp.concatenate([params["b_cat"], params["b_attr"]])
    b_heads = jnp.pad(b_heads, (0, HEAD_PAD - n_heads)).reshape(1, HEAD_PAD)
    b_heads = b_heads.astype(jnp.float32)

    # Batch tile: divisor of B, <= 8, and <= B//2 when B >= 2 so the parallel grid axis
    # has extent >= 2 (keeps both v7x TensorCores busy).
    b_cap = max(1, min(8, B // 2)) if B >= 2 else 1
    b_tile = max(d for d in range(1, b_cap + 1) if B % d == 0)

    # Spatial tile: largest multiple-of-128 divisor of S within a budget for the
    # double-buffered f32 x block; fall back to the full-S block (legal, and VMEM stays
    # bounded because the conv is chunked in-kernel).
    x_budget = 8 * 1024 * 1024
    cap = max(128, min(2048, (x_budget // max(1, b_tile * C * 4)) // 128 * 128))
    s_cands = [t for t in range(128, min(S, cap) + 1, 128) if S % t == 0]
    s_tile = max(s_cands) if s_cands else S
    m_chunk = 128 if s_tile % 128 == 0 else s_tile
    grid = (B // b_tile, S // s_tile)

    kernel = functools.partial(_finetune_kernel, b_tile=b_tile, m_chunk=m_chunk)

    flops = (2 * B * S * C * FEAT_DIM
             + 2 * B * FEAT_DIM * FEAT_DIM
             + 2 * B * FEAT_DIM * HEAD_PAD)
    bytes_accessed = (x.size * 4 + conv_w.size * 2 + w1_t.size * 2 + w_heads_t.size * 2
                      + (conv_b.size + b1.size + b_heads.size) * 4
                      + B * HEAD_PAD * 4)

    out = pl.pallas_call(
        kernel,
        out_shape=jax.ShapeDtypeStruct((B, 1, HEAD_PAD), jnp.float32),
        grid_spec=pltpu.PrefetchScalarGridSpec(
            num_scalar_prefetch=0,
            grid=grid,
            in_specs=[
                pl.BlockSpec((b_tile, C, s_tile), lambda b, s: (b, 0, s)),     # x (f32)
                pl.BlockSpec((C, FEAT_DIM), lambda b, s: (0, 0)),              # conv_w
                pl.BlockSpec((1, FEAT_DIM), lambda b, s: (0, 0)),              # conv_b
                pl.BlockSpec((FEAT_DIM, FEAT_DIM), lambda b, s: (0, 0)),       # w1 (in,out)
                pl.BlockSpec((1, FEAT_DIM), lambda b, s: (0, 0)),              # b1
                pl.BlockSpec((FEAT_DIM, HEAD_PAD), lambda b, s: (0, 0)),       # heads (in,out)
                pl.BlockSpec((1, HEAD_PAD), lambda b, s: (0, 0)),              # head bias
            ],
            out_specs=pl.BlockSpec((b_tile, 1, HEAD_PAD), lambda b, s: (b, 0, 0)),
            scratch_shapes=[pltpu.VMEM((b_tile, FEAT_DIM), jnp.float32)],
        ),
        compiler_params=pltpu.CompilerParams(
            dimension_semantics=("parallel", "arbitrary"),
            vmem_limit_bytes=_vmem_limit_bytes(),
        ),
        cost_estimate=pl.CostEstimate(
            flops=int(flops), transcendentals=0, bytes_accessed=int(bytes_accessed)),
    )(x, conv_w, conv_b, w1_t, b1, w_heads_t, b_heads)

    out = out[:, 0, :]
    cats = out[:, :NUM_CATEGORY_CLASSES]
    attrs = out[:, NUM_CATEGORY_CLASSES:NUM_CATEGORY_CLASSES + NUM_ATTRIBUTE_CLASSES]
    return [cats, attrs]


def _reference_forward(x_nchw, params, category_item, attribute_item, attribute2_item,
                       category_attribute_map, matmul_dtype):
    """Pure-JAX reference. matmul_dtype=bf16 mirrors the kernel's precision contract
    (bf16 matmul operands, f32 accumulation); matmul_dtype=f32 is the module check."""
    lst_indices = sorted(int(i) for i in category_attribute_map[int(category_item)])
    attr, attr2 = int(attribute_item), int(attribute2_item)
    w_attr_mod = _pruned_attr_weight(params["w_attr"], lst_indices, attr, attr2)

    B, C, H, W = x_nchw.shape
    S = H * W
    md = matmul_dtype
    x = x_nchw.reshape(B, C, S).astype(md)
    conv = jnp.einsum("bcs,cd->bsd", x, params["conv_w"].astype(md),
                      preferred_element_type=jnp.float32)
    conv = jnp.maximum(conv + params["conv_b"][None, None, :], 0.0)
    f = jnp.mean(conv, axis=1)                                     # (B, D)
    h = jnp.maximum(
        jnp.einsum("bi,oi->bo", f.astype(md), params["w1"].astype(md),
                   preferred_element_type=jnp.float32) + params["b1"], 0.0)
    h_m = h.astype(md)
    cats = jnp.maximum(
        jnp.einsum("bi,oi->bo", h_m, params["w_cat"].astype(md),
                   preferred_element_type=jnp.float32) + params["b_cat"], 0.0)
    attrs = jnp.maximum(
        jnp.einsum("bi,oi->bo", h_m, w_attr_mod.astype(md),
                   preferred_element_type=jnp.float32) + params["b_attr"], 0.0)
    return [cats, attrs]


def _init_params(key, c_in):
    ks = jax.random.split(key, 8)
    scale = 0.05
    return {
        "conv_w": scale * jax.random.normal(ks[0], (c_in, FEAT_DIM), jnp.float32),
        "conv_b": scale * jax.random.normal(ks[1], (FEAT_DIM,), jnp.float32),
        "w1":     scale * jax.random.normal(ks[2], (FEAT_DIM, FEAT_DIM), jnp.float32),
        "b1":     scale * jax.random.normal(ks[3], (FEAT_DIM,), jnp.float32),
        "w_cat":  scale * jax.random.normal(ks[4], (NUM_CATEGORY_CLASSES, FEAT_DIM), jnp.float32),
        "b_cat":  scale * jax.random.normal(ks[5], (NUM_CATEGORY_CLASSES,), jnp.float32),
        "w_attr": scale * jax.random.normal(ks[6], (NUM_ATTRIBUTE_CLASSES, FEAT_DIM), jnp.float32),
        "b_attr": scale * jax.random.normal(ks[7], (NUM_ATTRIBUTE_CLASSES,), jnp.float32),
    }


if __name__ == "__main__":
    key = jax.random.PRNGKey(0)
    kx, kp = jax.random.split(key)

    B, C, H, W = 2, 4, 16, 16
    x = jax.random.normal(kx, (B, C, H, W), jnp.float32)      # NCHW, like the PyTorch module
    params = _init_params(kp, C)

    # Synthetic category -> allowed-attribute-index mapping (stand-in for the files).
    category_attribute_map = {
        0: [1, 3, 4, 7, 9, 12],
        1: [0, 2, 5, 6, 10, 13, 15],
    }
    category_item, attribute_item, attribute2_item = 0, 3, 9

    outs = finetune_forward(x, params, category_item, attribute_item, attribute2_item,
                            category_attribute_map)
    outs = jax.block_until_ready(outs)

    # Check against a reference using the kernel's precision contract
    # (bf16 matmul operands, f32 accumulation).
    refs_bf16 = _reference_forward(x, params, category_item, attribute_item,
                                   attribute2_item, category_attribute_map,
                                   matmul_dtype=jnp.bfloat16)
    for o, r in zip(outs, refs_bf16):
        assert o.shape == r.shape
        assert jnp.allclose(o, r, atol=1e-2, rtol=1e-2)

    # Loose sanity check against the full-f32 module semantics.
    refs_f32 = _reference_forward(x, params, category_item, attribute_item,
                                  attribute2_item, category_attribute_map,
                                  matmul_dtype=jnp.float32)
    for o, r in zip(outs, refs_f32):
        assert jnp.allclose(o, r, atol=5e-2, rtol=5e-2)

    print("KERNEL_OK")
</pallas_src>

<mosaic_0001>
module attributes {stable_mosaic.version = 11 : i64} {
  func.func @_finetune_kernel(%arg0: i32, %arg1: i32, %arg2: memref<1x4x256xf32, #tpu.memory_space<vmem>>, %arg3: memref<4x512xbf16, #tpu.memory_space<vmem>>, %arg4: memref<1x512xf32, #tpu.memory_space<vmem>>, %arg5: memref<512x512xbf16, #tpu.memory_space<vmem>>, %arg6: memref<1x512xf32, #tpu.memory_space<vmem>>, %arg7: memref<512x128xbf16, #tpu.memory_space<vmem>>, %arg8: memref<1x128xf32, #tpu.memory_space<vmem>>, %arg9: memref<1x1x128xf32, #tpu.memory_space<vmem>>, %arg10: memref<1x512xf32, #tpu.memory_space<vmem>>) attributes {dimension_semantics = [#tpu.dimension_semantics<parallel>, #tpu.dimension_semantics<arbitrary>], iteration_bounds = array<i64: 2, 1>, scalar_prefetch = 0 : i64, scratch_operands = 1 : i64, tpu.core_type = #tpu.core_type<tc>, window_params = [{transform_indices = @transform_0, window_bounds = array<i64: 1, 4, 256>}, {pipeline_mode = #tpu.pipeline_mode<synchronous>, transform_indices = @transform_1, window_bounds = array<i64: 4, 512>}, {pipeline_mode = #tpu.pipeline_mode<synchronous>, transform_indices = @transform_2, window_bounds = array<i64: 1, 512>}, {pipeline_mode = #tpu.pipeline_mode<synchronous>, transform_indices = @transform_3, window_bounds = array<i64: 512, 512>}, {pipeline_mode = #tpu.pipeline_mode<synchronous>, transform_indices = @transform_4, window_bounds = array<i64: 1, 512>}, {pipeline_mode = #tpu.pipeline_mode<synchronous>, transform_indices = @transform_5, window_bounds = array<i64: 512, 128>}, {pipeline_mode = #tpu.pipeline_mode<synchronous>, transform_indices = @transform_6, window_bounds = array<i64: 1, 128>}, {transform_indices = @transform_7, window_bounds = array<i64: 1, 1, 128>}]} {
    %c0_i32 = arith.constant 0 : i32
    %0 = arith.cmpi eq, %arg1, %c0_i32 : i32
    %1 = arith.extui %0 : i1 to i32
    %c0_i32_0 = arith.constant 0 : i32
    %2 = arith.cmpi ne, %1, %c0_i32_0 : i32
    scf.if %2 {
      %cst_21 = arith.constant 0.000000e+00 : f32
      %34 = vector.broadcast %cst_21 : f32 to vector<1x512xf32>
      %c0_22 = arith.constant 0 : index
      %c0_23 = arith.constant 0 : index
      %35 = vector.load %arg10[%c0_22, %c0_23] : memref<1x512xf32, #tpu.memory_space<vmem>>, vector<1x512xf32>
      tpu.vector_store %arg10[%c0_22, %c0_23], %34 {strides = array<i32>} : memref<1x512xf32, #tpu.memory_space<vmem>>, vector<1x512xf32>,
    } else {
    }
    %c0 = arith.constant 0 : index
    %c0_1 = arith.constant 0 : index
    %3 = vector.load %arg3[%c0, %c0_1] : memref<4x512xbf16, #tpu.memory_space<vmem>>, vector<4x512xbf16>
    %c0_2 = arith.constant 0 : index
    %c0_3 = arith.constant 0 : index
    %4 = vector.load %arg4[%c0_2, %c0_3] : memref<1x512xf32, #tpu.memory_space<vmem>>, vector<1x512xf32>
    %cst = arith.constant 0.000000e+00 : f32
    %5 = vector.broadcast %cst : f32 to vector<1x512xf32>
    %c0_4 = arith.constant 0 : index
    %c0_5 = arith.constant 0 : index
    %c0_6 = arith.constant 0 : index
    %6 = vector.load %arg2[%c0_4, %c0_5, %c0_6] : memref<1x4x256xf32, #tpu.memory_space<vmem>>, vector<1x4x128xf32>
    %7 = vector.shape_cast %6 : vector<1x4x128xf32> to vector<4x128xf32>
    %8 = arith.truncf %7 : vector<4x128xf32> to vector<4x128xbf16>
    %cst_7 = arith.constant dense<0.000000e+00> : vector<128x512xf32>
    %9 = tpu.matmul %8, %3, %cst_7 {dimension_numbers = #tpu.dot_dimension_numbers<[0], [0], [1], [1], [0, 1, 1, 1], [], []>} : vector<4x128xbf16>, vector<4x512xbf16>, vector<128x512xf32> -> vector<128x512xf32>
    %10 = vector.broadcast %4 : vector<1x512xf32> to vector<128x512xf32>
    %11 = arith.addf %9, %10 : vector<128x512xf32>
    %cst_8 = arith.constant 0.000000e+00 : f32
    %12 = vector.broadcast %cst_8 : f32 to vector<128x512xf32>
    %13 = arith.maximumf %11, %12 : vector<128x512xf32>
    %cst_9 = arith.constant dense<0.000000e+00> : vector<512xf32>
    %14 = vector.multi_reduction <add>, %13, %cst_9 [0] : vector<128x512xf32> to vector<512xf32>
    %15 = vector.shape_cast %14 : vector<512xf32> to vector<1x512xf32>
    %16 = arith.addf %5, %15 : vector<1x512xf32>
    %c0_10 = arith.constant 0 : index
    %c0_11 = arith.constant 0 : index
    %c128 = arith.constant 128 : index
    %17 = vector.load %arg2[%c0_10, %c0_11, %c128] : memref<1x4x256xf32, #tpu.memory_space<vmem>>, vector<1x4x128xf32>
    %18 = vector.shape_cast %17 : vector<1x4x128xf32> to vector<4x128xf32>
    %19 = arith.truncf %18 : vector<4x128xf32> to vector<4x128xbf16>
    %cst_12 = arith.constant dense<0.000000e+00> : vector<128x512xf32>
    %20 = tpu.matmul %19, %3, %cst_12 {dimension_numbers = #tpu.dot_dimension_numbers<[0], [0], [1], [1], [0, 1, 1, 1], [], []>} : vector<4x128xbf16>, vector<4x512xbf16>, vector<128x512xf32> -> vector<128x512xf32>
    %21 = vector.broadcast %4 : vector<1x512xf32> to vector<128x512xf32>
    %22 = arith.addf %20, %21 : vector<128x512xf32>
    %cst_13 = arith.constant 0.000000e+00 : f32
    %23 = vector.broadcast %cst_13 : f32 to vector<128x512xf32>
    %24 = arith.maximumf %22, %23 : vector<128x512xf32>
    %cst_14 = arith.constant dense<0.000000e+00> : vector<512xf32>
    %25 = vector.multi_reduction <add>, %24, %cst_14 [0] : vector<128x512xf32> to vector<512xf32>
    %26 = vector.shape_cast %25 : vector<512xf32> to vector<1x512xf32>
    %27 = arith.addf %16, %26 : vector<1x512xf32>
    %c0_15 = arith.constant 0 : index
    %c0_16 = arith.constant 0 : index
    %28 = vector.load %arg10[%c0_15, %c0_16] : memref<1x512xf32, #tpu.memory_space<vmem>>, vector<1x512xf32>
    %29 = arith.addf %28, %27 : vector<1x512xf32>
    %c0_17 = arith.constant 0 : index
    %c0_18 = arith.constant 0 : index
    %30 = vector.load %arg10[%c0_17, %c0_18] : memref<1x512xf32, #tpu.memory_space<vmem>>, vector<1x512xf32>
    tpu.vector_store %arg10[%c0_17, %c0_18], %29 {strides = array<i32>} : memref<1x512xf32, #tpu.memory_space<vmem>>, vector<1x512xf32>,
    %c0_i32_19 = arith.constant 0 : i32
    %31 = arith.cmpi eq, %arg1, %c0_i32_19 : i32
    %32 = arith.extui %31 : i1 to i32
    %c0_i32_20 = arith.constant 0 : i32
    %33 = arith.cmpi ne, %32, %c0_i32_20 : i32
    scf.if %33 {
      %c0_21 = arith.constant 0 : index
      %c0_22 = arith.constant 0 : index
      %34 = vector.load %arg10[%c0_21, %c0_22] : memref<1x512xf32, #tpu.memory_space<vmem>>, vector<1x512xf32>
      %35 = arith.truncf %34 : vector<1x512xf32> to vector<1x512xbf16>
      %c0_23 = arith.constant 0 : index
      %c0_24 = arith.constant 0 : index
      %36 = vector.load %arg5[%c0_23, %c0_24] : memref<512x512xbf16, #tpu.memory_space<vmem>>, vector<512x512xbf16>
      %cst_25 = arith.constant dense<0.000000e+00> : vector<1x512xf32>
      %37 = tpu.matmul %35, %36, %cst_25 {dimension_numbers = #tpu.dot_dimension_numbers<[1], [0], [0], [1], [0, 0, 1, 1], [], []>} : vector<1x512xbf16>, vector<512x512xbf16>, vector<1x512xf32> -> vector<1x512xf32>
      %c0_26 = arith.constant 0 : index
      %c0_27 = arith.constant 0 : index
      %38 = vector.load %arg6[%c0_26, %c0_27] : memref<1x512xf32, #tpu.memory_space<vmem>>, vector<1x512xf32>
      %39 = arith.addf %37, %38 : vector<1x512xf32>
      %cst_28 = arith.constant 0.000000e+00 : f32
      %40 = vector.broadcast %cst_28 : f32 to vector<1x512xf32>
      %41 = arith.maximumf %39, %40 : vector<1x512xf32>
      %42 = arith.truncf %41 : vector<1x512xf32> to vector<1x512xbf16>
      %c0_29 = arith.constant 0 : index
      %c0_30 = arith.constant 0 : index
      %43 = vector.load %arg7[%c0_29, %c0_30] : memref<512x128xbf16, #tpu.memory_space<vmem>>, vector<512x128xbf16>
      %cst_31 = arith.constant dense<0.000000e+00> : vector<1x128xf32>
      %44 = tpu.matmul %42, %43, %cst_31 {dimension_numbers = #tpu.dot_dimension_numbers<[1], [0], [0], [1], [0, 0, 1, 1], [], []>} : vector<1x512xbf16>, vector<512x128xbf16>, vector<1x128xf32> -> vector<1x128xf32>
      %c0_32 = arith.constant 0 : index
      %c0_33 = arith.constant 0 : index
      %45 = vector.load %arg8[%c0_32, %c0_33] : memref<1x128xf32, #tpu.memory_space<vmem>>, vector<1x128xf32>
      %46 = arith.addf %44, %45 : vector<1x128xf32>
      %cst_34 = arith.constant 0.000000e+00 : f32
      %47 = vector.broadcast %cst_34 : f32 to vector<1x128xf32>
      %48 = arith.maximumf %46, %47 : vector<1x128xf32>
      %49 = vector.shape_cast %48 : vector<1x128xf32> to vector<1x1x128xf32>
      %c0_35 = arith.constant 0 : index
      %c0_36 = arith.constant 0 : index
      %c0_37 = arith.constant 0 : index
      %50 = vector.load %arg9[%c0_35, %c0_36, %c0_37] : memref<1x1x128xf32, #tpu.memory_space<vmem>>, vector<1x1x128xf32>
      tpu.vector_store %arg9[%c0_35, %c0_36, %c0_37], %49 {strides = array<i32>} : memref<1x1x128xf32, #tpu.memory_space<vmem>>, vector<1x1x128xf32>,
    } else {
    }
    return
  }
  func.func @transform_0(%arg0: i32, %arg1: i32) -> (i32, i32, i32) {
    %c0_i32 = arith.constant 0 : i32
    %c0_i32_0 = arith.constant 0 : i32
    return %arg0, %c0_i32, %arg1 : i32, i32, i32
  }
  func.func @transform_1(%arg0: i32, %arg1: i32) -> (i32, i32) {
    %c0_i32 = arith.constant 0 : i32
    %c0_i32_0 = arith.constant 0 : i32
    %c0_i32_1 = arith.constant 0 : i32
    return %c0_i32, %c0_i32_0 : i32, i32
  }
  func.func @transform_2(%arg0: i32, %arg1: i32) -> (i32, i32) {
    %c0_i32 = arith.constant 0 : i32
    %c0_i32_0 = arith.constant 0 : i32
    %c0_i32_1 = arith.constant 0 : i32
    return %c0_i32, %c0_i32_0 : i32, i32
  }
  func.func @transform_3(%arg0: i32, %arg1: i32) -> (i32, i32) {
    %c0_i32 = arith.constant 0 : i32
    %c0_i32_0 = arith.constant 0 : i32
    %c0_i32_1 = arith.constant 0 : i32
    return %c0_i32, %c0_i32_0 : i32, i32
  }
  func.func @transform_4(%arg0: i32, %arg1: i32) -> (i32, i32) {
    %c0_i32 = arith.constant 0 : i32
    %c0_i32_0 = arith.constant 0 : i32
    %c0_i32_1 = arith.constant 0 : i32
    return %c0_i32, %c0_i32_0 : i32, i32
  }
  func.func @transform_5(%arg0: i32, %arg1: i32) -> (i32, i32) {
    %c0_i32 = arith.constant 0 : i32
    %c0_i32_0 = arith.constant 0 : i32
    %c0_i32_1 = arith.constant 0 : i32
    return %c0_i32, %c0_i32_0 : i32, i32
  }
  func.func @transform_6(%arg0: i32, %arg1: i32) -> (i32, i32) {
    %c0_i32 = arith.constant 0 : i32
    %c0_i32_0 = arith.constant 0 : i32
    %c0_i32_1 = arith.constant 0 : i32
    return %c0_i32, %c0_i32_0 : i32, i32
  }
  func.func @transform_7(%arg0: i32, %arg1: i32) -> (i32, i32, i32) {
    %c0_i32 = arith.constant 0 : i32
    %c0_i32_0 = arith.constant 0 : i32
    %c0_i32_1 = arith.constant 0 : i32
    return %arg0, %c0_i32, %c0_i32_0 : i32, i32, i32
  }
}

</mosaic_0001>

<llo_original>
// kernel: tpu_custom_call.1
$region0: #{tpu_custom_call.1}
  #allocation0 [shape = 'u32[]', space=smem, size = 0x4, offset = 0x4, fixed_abs, tag = 'smem constant byte address 0x4 - core index']
  #allocation1 [shape = 'u32[144,128]{1,0:T(1,128)}', space=vmem, size = 0x12000, scoped, tag = 'internal scratch']
  #allocation2 [shape = 'f32[1,512]{1,0:T(1,128)}', space=vmem, size = 0x800, scoped, tag = 'scratch operand']
  %s0 = inlined_call_operand.hbm [shape: f32[2,4,256], index: 0, kind: input, shape index: {}]
  %s1 = inlined_call_operand.hbm [shape: bf16[4,512], index: 1, kind: input, shape index: {}]
  %s2 = inlined_call_operand.vmem [shape: f32[1,512], index: 2, kind: input, shape index: {}]
  %s3 = inlined_call_operand.hbm [shape: bf16[512,512], index: 3, kind: input, shape index: {}]
  %s4 = inlined_call_operand.vmem [shape: f32[1,512], index: 4, kind: input, shape index: {}]
  %s5 = inlined_call_operand.hbm [shape: bf16[512,128], index: 5, kind: input, shape index: {}]
  %s6 = inlined_call_operand.vmem [shape: f32[1,128], index: 6, kind: input, shape index: {}]
  %s7 = inlined_call_operand.hbm [shape: f32[2,1,128], index: 7, kind: output, shape index: {}]
  %s8 = sld [smem:[#allocation0]]
  $region85: #{tpu_custom_call.1} parent=0
    _
  %s10 = ssub.s32 1, %s8
  %s11 = scalar_select 0, %s10, %s8
  $region1: #{tpu_custom_call.1} parent=0
    #allocation3 [shape = 'u8[8192]{0}', space=vmem, size = 0x2000, scoped, tag = 'input window, operand 0']
    #allocation4 [shape = 's32[2]{0}', space=sflag, size = 0x8, scoped, tag = 'scoped memory for tpu_custom_call.1']
    #allocation5 [shape = 's32[2]{0}', space=sflag, size = 0x8, scoped, tag = 'scoped memory for tpu_custom_call.1']
    #allocation6 [shape = 'u8[4096]{0}', space=vmem, size = 0x1000, scoped, tag = 'input window, operand 1, single buffered']
    #allocation7 [shape = 's32[1]{0}', space=sflag, size = 0x4, scoped, tag = 'scoped memory for tpu_custom_call.1']
    #allocation8 [shape = 'u8[524288]{0}', space=vmem, size = 0x80000, scoped, tag = 'input window, operand 3, single buffered']
    #allocation9 [shape = 'u8[131072]{0}', space=vmem, size = 0x20000, scoped, tag = 'input window, operand 5, single buffered']
    #allocation10 [shape = 's32[1]{0}', space=sflag, size = 0x4, scoped, tag = 'scoped memory for tpu_custom_call.1']
    #allocation11 [shape = 'u8[1024]{0}', space=vmem, size = 0x400, scoped, tag = 'output window, operand 0']
    %12 = vsyncpa [#allocation4], 0
    %s13 = scalar_lea.sflag [#allocation4], 1
    %14 = vsyncpa %s13, 0
    %15 = vsyncpa [#allocation7], 0
    %16 = vsyncpa [#allocation10], 0
    %17 = vsyncpa [#allocation5], 0
    %s18 = scalar_lea.sflag [#allocation5], 1
    %19 = vsyncpa %s18, 0
    loop: start=0, step=1, limit=4
    $region2: #{tpu_custom_call.1} parent=1 // loop_pre_header
      _
    $region3: #{tpu_custom_call.1} parent=1 // loop_header
      %s21 = sphi 0, %s25
      %p22 = scmp.ge.s32.totalorder %s21, 4
      %s28 = sphi 0, %s40
      %s29 = sphi 0, %s36
      %s30 = sphi 0, %s28
      %s31 = sphi 0, %s29
      %s32 = sphi 0, %s30
      %s33 = sphi 0, %s31
      %s45 = sphi 0, %s47
      %s48 = sphi 0, %s45
      %s49 = sphi 0, %s48
      %s65 = sphi 0, %s49
      %s69 = sphi 0, %s69
      %s71 = sphi 0, %s69
      %s72 = sphi 0, %s71
      %s86 = sphi 0, %s72
      %s90 = sphi 0, %s90
      %s92 = sphi 0, %s90
      %s93 = sphi 0, %s92
      %s107 = sphi 0, %s93
      %s111 = sphi 0, %s111
      %s113 = sphi 0, %s111
      %s114 = sphi 0, %s113
      %s128 = sphi 0, %s114
      %s132 = sphi 0, %s132
      %s134 = sphi 0, %s132
      %s135 = sphi 0, %s134
      %s149 = sphi 0, %s135
      %s153 = sphi 0, %s153
      %s155 = sphi 0, %s153
      %s156 = sphi 0, %s155
      %s170 = sphi 0, %s156
      %s174 = sphi 0, %s174
      %s176 = sphi 0, %s174
      %s177 = sphi 0, %s176
      %s191 = sphi 0, %s177
      %s197 = sphi 0, %s199
      %s200 = sphi 0, %s197
      %s201 = sphi 0, %s200
      %s217 = sphi 0, %s201
    $region4: #{tpu_custom_call.1} parent=1 // loop_header_branch
      %24 = sbr.rel (%p22) target = $region8
    $region5: #{tpu_custom_call.1} parent=1 // loop_body
      %s26 = ssub.s32 %s21, 1
      %s27 = ssub.s32 %s21, 2
      %s34 = sadd.s32 1, %s29
      %p35 = scmp.ge.s32.totalorder %s34, 1
      %s36 = scalar_select %p35, 0, %s34
      %s37 = sadd.s32 1, %s28
      %s38 = scalar_select %p35, %s37, %s28
      %p39 = scmp.ge.s32.totalorder %s38, 2
      %s40 = scalar_select %p39, 0, %s38
      %s41 = ssub.s32 %s28, %s40
      %s42 = ssub.s32 %s29, %s36
      %s43 = sor.u32 %s41, %s42
      %p44 = scmp.eq.s32.totalorder %s43, 0
      %s46 = sadd.s32 %s45, 1
      %s47 = scalar_select %p44, %s45, %s46
      %p50 = pneg %p44
      %p51 = scmp.eq.s32.totalorder %s21, 1
      %p52 = por %p50, %p51
      %p53 = scmp.ne.s32.totalorder %s45, %s48
      %p54 = scmp.eq.s32.totalorder %s21, 0
      %p55 = por %p53, %p54
      %p56 = scmp.ne.s32.totalorder %s45, %s48
      %p57 = scmp.eq.s32.totalorder %s26, 1
      %p58 = por %p56, %p57
      %p59 = scmp.ne.s32.totalorder %s48, %s49
      %p60 = scmp.eq.s32.totalorder %s26, 0
      %p61 = por %p59, %p60
      %p62 = scmp.ne.s32.totalorder %s48, %s49
      %p63 = scmp.eq.s32.totalorder %s27, 1
      %p64 = por %p62, %p63
      %p66 = scmp.ne.s32.totalorder %s49, %s65
      %p67 = scmp.eq.s32.totalorder %s27, 0
      %p68 = por %p66, %p67
      %s70 = sadd.s32 %s69, 1
      %p73 = scmp.eq.s32.totalorder %s21, 1
      %p74 = scmp.ne.s32.totalorder %s69, %s71
      %p75 = scmp.eq.s32.totalorder %s21, 0
      %p76 = por %p74, %p75
      %p77 = scmp.ne.s32.totalorder %s69, %s71
      %p78 = scmp.eq.s32.totalorder %s26, 1
      %p79 = por %p77, %p78
      %p80 = scmp.ne.s32.totalorder %s71, %s72
      %p81 = scmp.eq.s32.totalorder %s26, 0
      %p82 = por %p80, %p81
      %p83 = scmp.ne.s32.totalorder %s71, %s72
      %p84 = scmp.eq.s32.totalorder %s27, 1
      %p85 = por %p83, %p84
      %p87 = scmp.ne.s32.totalorder %s72, %s86
      %p88 = scmp.eq.s32.totalorder %s27, 0
      %p89 = por %p87, %p88
      %s91 = sadd.s32 %s90, 1
      %p94 = scmp.eq.s32.totalorder %s21, 1
      %p95 = scmp.ne.s32.totalorder %s90, %s92
      %p96 = scmp.eq.s32.totalorder %s21, 0
      %p97 = por %p95, %p96
      %p98 = scmp.ne.s32.totalorder %s90, %s92
      %p99 = scmp.eq.s32.totalorder %s26, 1
      %p100 = por %p98, %p99
      %p101 = scmp.ne.s32.totalorder %s92, %s93
      %p102 = scmp.eq.s32.totalorder %s26, 0
      %p103 = por %p101, %p102
      %p104 = scmp.ne.s32.totalorder %s92, %s93
      %p105 = scmp.eq.s32.totalorder %s27, 1
      %p106 = por %p104, %p105
      %p108 = scmp.ne.s32.totalorder %s93, %s107
      %p109 = scmp.eq.s32.totalorder %s27, 0
      %p110 = por %p108, %p109
      %s112 = sadd.s32 %s111, 1
      %p115 = scmp.eq.s32.totalorder %s21, 1
      %p116 = scmp.ne.s32.totalorder %s111, %s113
      %p117 = scmp.eq.s32.totalorder %s21, 0
      %p118 = por %p116, %p117
      %p119 = scmp.ne.s32.totalorder %s111, %s113
      %p120 = scmp.eq.s32.totalorder %s26, 1
      %p121 = por %p119, %p120
      %p122 = scmp.ne.s32.totalorder %s113, %s114
      %p123 = scmp.eq.s32.totalorder %s26, 0
      %p124 = por %p122, %p123
      %p125 = scmp.ne.s32.totalorder %s113, %s114
      %p126 = scmp.eq.s32.totalorder %s27, 1
      %p127 = por %p125, %p126
      %p129 = scmp.ne.s32.totalorder %s114, %s128
      %p130 = scmp.eq.s32.totalorder %s27, 0
      %p131 = por %p129, %p130
      %s133 = sadd.s32 %s132, 1
      %p136 = scmp.eq.s32.totalorder %s21, 1
      %p137 = scmp.ne.s32.totalorder %s132, %s134
      %p138 = scmp.eq.s32.totalorder %s21, 0
      %p139 = por %p137, %p138
      %p140 = scmp.ne.s32.totalorder %s132, %s134
      %p141 = scmp.eq.s32.totalorder %s26, 1
      %p142 = por %p140, %p141
      %p143 = scmp.ne.s32.totalorder %s134, %s135
      %p144 = scmp.eq.s32.totalorder %s26, 0
      %p145 = por %p143, %p144
      %p146 = scmp.ne.s32.totalorder %s134, %s135
      %p147 = scmp.eq.s32.totalorder %s27, 1
      %p148 = por %p146, %p147
      %p150 = scmp.ne.s32.totalorder %s135, %s149
      %p151 = scmp.eq.s32.totalorder %s27, 0
      %p152 = por %p150, %p151
      %s154 = sadd.s32 %s153, 1
      %p157 = scmp.eq.s32.totalorder %s21, 1
      %p158 = scmp.ne.s32.totalorder %s153, %s155
      %p159 = scmp.eq.s32.totalorder %s21, 0
      %p160 = por %p158, %p159
      %p161 = scmp.ne.s32.totalorder %s153, %s155
      %p162 = scmp.eq.s32.totalorder %s26, 1
      %p163 = por %p161, %p162
      %p164 = scmp.ne.s32.totalorder %s155, %s156
      %p165 = scmp.eq.s32.totalorder %s26, 0
      %p166 = por %p164, %p165
      %p167 = scmp.ne.s32.totalorder %s155, %s156
      %p168 = scmp.eq.s32.totalorder %s27, 1
      %p169 = por %p167, %p168
      %p171 = scmp.ne.s32.totalorder %s156, %s170
      %p172 = scmp.eq.s32.totalorder %s27, 0
      %p173 = por %p171, %p172
      %s175 = sadd.s32 %s174, 1
      %p178 = scmp.eq.s32.totalorder %s21, 1
      %p179 = scmp.ne.s32.totalorder %s174, %s176
      %p180 = scmp.eq.s32.totalorder %s21, 0
      %p181 = por %p179, %p180
      %p182 = scmp.ne.s32.totalorder %s174, %s176
      %p183 = scmp.eq.s32.totalorder %s26, 1
      %p184 = por %p182, %p183
      %p185 = scmp.ne.s32.totalorder %s176, %s177
      %p186 = scmp.eq.s32.totalorder %s26, 0
      %p187 = por %p185, %p186
      %p188 = scmp.ne.s32.totalorder %s176, %s177
      %p189 = scmp.eq.s32.totalorder %s27, 1
      %p190 = por %p188, %p189
      %p192 = scmp.ne.s32.totalorder %s177, %s191
      %p193 = scmp.eq.s32.totalorder %s27, 0
      %p194 = por %p192, %p193
      %s195 = ssub.s32 %s28, %s40
      %p196 = scmp.eq.s32.totalorder %s195, 0
      %s198 = sadd.s32 %s197, 1
      %s199 = scalar_select %p196, %s197, %s198
      %p202 = pneg %p196
      %p203 = scmp.eq.s32.totalorder %s21, 1
      %p204 = por %p202, %p203
      %p205 = scmp.ne.s32.totalorder %s197, %s200
      %p206 = scmp.eq.s32.totalorder %s21, 0
      %p207 = por %p205, %p206
      %p208 = scmp.ne.s32.totalorder %s197, %s200
      %p209 = scmp.eq.s32.totalorder %s26, 1
      %p210 = por %p208, %p209
      %p211 = scmp.ne.s32.totalorder %s200, %s201
      %p212 = scmp.eq.s32.totalorder %s26, 0
      %p213 = por %p211, %p212
      %p214 = scmp.ne.s32.totalorder %s200, %s201
      %p215 = scmp.eq.s32.totalorder %s27, 1
      %p216 = por %p214, %p215
      %p218 = scmp.ne.s32.totalorder %s201, %s217
      %p219 = scmp.eq.s32.totalorder %s27, 0
      %p220 = por %p218, %p219
      %p221 = scmp.le.s32.totalorder 1, %s21
      %p222 = scmp.lt.s32.totalorder %s21, 3
      %p223 = pnand %p221, %p222
      %p224 = pneg %p223
      // Predicated region
      $region9: #{tpu_custom_call.1} parent=5 // pred_check
        _
      $region10: #{tpu_custom_call.1} parent=5 // pred_check_branch
        %226 = sbr.rel (%p223) target = $region12
      $region11: #{tpu_custom_call.1} parent=5 // pred_region
        %s227 = ssub.s32 %s21, 1
        // Predicated region
        $region13: #{tpu_custom_call.1} parent=11 // pred_check
          %p228 = pneg %p82
        $region14: #{tpu_custom_call.1} parent=11 // pred_check_branch
          %230 = sbr.rel (%p228) target = $region16
        $region15: #{tpu_custom_call.1} parent=11 // pred_region
          %s232 = ssub.s32 128, 128
          %233 = vsyncadd [#allocation7], %s232
          %s235 = sshll.u32 [#allocation6], 4
          %s236 = int_to_ptr.vmem [resolvable:$true] %s235
          %238 = dma.hbm_to_vmem [thread:$0]  %s1, 128, %s236, [#allocation7]
        $region16: #{tpu_custom_call.1} parent=11 // pred_fallthru
          _
        // Predicated region
        $region17: #{tpu_custom_call.1} parent=11 // pred_check
          %p239 = pneg %p103
        $region18: #{tpu_custom_call.1} parent=11 // pred_check_branch
          %241 = sbr.rel (%p239) target = $region20
        $region19: #{tpu_custom_call.1} parent=11 // pred_region
          _
        $region20: #{tpu_custom_call.1} parent=11 // pred_fallthru
          _
        // Predicated region
        $region21: #{tpu_custom_call.1} parent=11 // pred_check
          %p242 = pneg %p124
        $region22: #{tpu_custom_call.1} parent=11 // pred_check_branch
          %244 = sbr.rel (%p242) target = $region24
        $region23: #{tpu_custom_call.1} parent=11 // pred_region
          %s246 = ssub.s32 16384, 16384
          %247 = vsyncadd [#allocation7], %s246
          %s248 = sshll.u32 [#allocation8], 4
          %s249 = int_to_ptr.vmem [resolvable:$true] %s248
          %254 = dma.hbm_to_vmem [thread:$0]  %s3, 16384, %s249, [#allocation7], 256, 256, 16
        $region24: #{tpu_custom_call.1} parent=11 // pred_fallthru
          _
        // Predicated region
        $region25: #{tpu_custom_call.1} parent=11 // pred_check
          %p255 = pneg %p145
        $region26: #{tpu_custom_call.1} parent=11 // pred_check_branch
          %257 = sbr.rel (%p255) target = $region28
        $region27: #{tpu_custom_call.1} parent=11 // pred_region
          _
        $region28: #{tpu_custom_call.1} parent=11 // pred_fallthru
          _
        // Predicated region
        $region29: #{tpu_custom_call.1} parent=11 // pred_check
          %p258 = pneg %p166
        $region30: #{tpu_custom_call.1} parent=11 // pred_check_branch
          %260 = sbr.rel (%p258) target = $region32
        $region31: #{tpu_custom_call.1} parent=11 // pred_region
          %s262 = ssub.s32 4096, 4096
          %263 = vsyncadd [#allocation10], %s262
          %s264 = sshll.u32 [#allocation9], 4
          %s265 = int_to_ptr.vmem [resolvable:$true] %s264
          %270 = dma.hbm_to_vmem [thread:$0]  %s5, 4096, %s265, [#allocation10], 64, 64, 4
        $region32: #{tpu_custom_call.1} parent=11 // pred_fallthru
          _
        // Predicated region
        $region33: #{tpu_custom_call.1} parent=11 // pred_check
          %p271 = pneg %p187
        $region34: #{tpu_custom_call.1} parent=11 // pred_check_branch
          %273 = sbr.rel (%p271) target = $region36
        $region35: #{tpu_custom_call.1} parent=11 // pred_region
          _
        $region36: #{tpu_custom_call.1} parent=11 // pred_fallthru
          _
      $region12: #{tpu_custom_call.1} parent=5 // pred_fallthru
        _
      %p274 = scmp.lt.s32.totalorder %s21, 2
      // Predicated region
      $region37: #{tpu_custom_call.1} parent=5 // pred_check
        %p275 = pneg %p274
      $region38: #{tpu_custom_call.1} parent=5 // pred_check_branch
        %277 = sbr.rel (%p275) target = $region40
      $region39: #{tpu_custom_call.1} parent=5 // pred_region
        // Predicated region
        $region41: #{tpu_custom_call.1} parent=39 // pred_check
          %p278 = pneg %p55
        $region42: #{tpu_custom_call.1} parent=39 // pred_check_branch
          %280 = sbr.rel (%p278) target = $region44
        $region43: #{tpu_custom_call.1} parent=39 // pred_region
          %s281 = sand.u32 %s45, 1
          %s282 = scalar_lea.sflag [#allocation4], %s281
          %s283 = sand.u32 %s45, 1
          %s284 = smul.addr %s283, 8
          %s285 = scalar_lea.vmem [#allocation3], %s284
          %s286 = smul.u32 2, %s29
          %s288 = ssub.s32 128, 128
          %289 = vsyncadd %s282, %s288
          %s290 = smul.addr %s28, 2
          %s291 = sadd.s32 %s286, %s290
          %s292 = smul.addr %s291, 64
          %s293 = scalar_lea.hbm %s0, %s292
          %s295 = sshll.u32 %s285, 4
          %s296 = int_to_ptr.vmem [resolvable:$true] %s295
          %298 = dma.hbm_to_vmem [thread:$0]  %s293, 128, %s296, %s282
        $region44: #{tpu_custom_call.1} parent=39 // pred_fallthru
          _
      $region40: #{tpu_custom_call.1} parent=5 // pred_fallthru
        _
      %p299 = scmp.le.s32.totalorder 1, %s21
      %p300 = scmp.lt.s32.totalorder %s21, 3
      %p301 = pnand %p299, %p300
      %p302 = pneg %p301
      // Predicated region
      $region45: #{tpu_custom_call.1} parent=5 // pred_check
        _
      $region46: #{tpu_custom_call.1} parent=5 // pred_check_branch
        %304 = sbr.rel (%p301) target = $region48
      $region47: #{tpu_custom_call.1} parent=5 // pred_region
        %s305 = ssub.s32 %s21, 1
        %s306 = sand.u32 %s48, 1
        %s307 = scalar_lea.sflag [#allocation4], %s306
        %s308 = sand.u32 %s48, 1
        %s309 = smul.addr %s308, 8
        %s310 = scalar_lea.vmem [#allocation3], %s309
        // Predicated region
        $region49: #{tpu_custom_call.1} parent=47 // pred_check
          %p311 = pneg %p61
        $region50: #{tpu_custom_call.1} parent=47 // pred_check_branch
          %313 = sbr.rel (%p311) target = $region52
        $region51: #{tpu_custom_call.1} parent=47 // pred_region
          %314 = dma.done %s307, 128
        $region52: #{tpu_custom_call.1} parent=47 // pred_fallthru
          _
        // Predicated region
        $region53: #{tpu_custom_call.1} parent=47 // pred_check
          %p315 = pneg %p82
        $region54: #{tpu_custom_call.1} parent=47 // pred_check_branch
          %317 = sbr.rel (%p315) target = $region56
        $region55: #{tpu_custom_call.1} parent=47 // pred_region
          %318 = dma.done [#allocation7], 128
        $region56: #{tpu_custom_call.1} parent=47 // pred_fallthru
          _
        // Predicated region
        $region57: #{tpu_custom_call.1} parent=47 // pred_check
          %p319 = pneg %p124
        $region58: #{tpu_custom_call.1} parent=47 // pred_check_branch
          %321 = sbr.rel (%p319) target = $region60
        $region59: #{tpu_custom_call.1} parent=47 // pred_region
          %322 = dma.done [#allocation7], 16384
        $region60: #{tpu_custom_call.1} parent=47 // pred_fallthru
          _
        // Predicated region
        $region61: #{tpu_custom_call.1} parent=47 // pred_check
          %p323 = pneg %p166
        $region62: #{tpu_custom_call.1} parent=47 // pred_check_branch
          %325 = sbr.rel (%p323) target = $region64
        $region63: #{tpu_custom_call.1} parent=47 // pred_region
          %326 = dma.done [#allocation10], 4096
        $region64: #{tpu_custom_call.1} parent=47 // pred_fallthru
          _
        %s327 = sand.u32 %s48, 1
        %s328 = scalar_lea.sflag [#allocation4], %s327
        %s329 = sand.u32 %s48, 1
        %s330 = smul.addr %s329, 8
        %s331 = scalar_lea.vmem [#allocation3], %s330
        %p332 = pneg %p61
        %p333 = pneg %p58
        %p334 = pneg %p82
        %p335 = pneg %p79
        %p336 = pneg %p103
        %p337 = pneg %p100
        %p338 = pneg %p124
        %p339 = pneg %p121
        %p340 = pneg %p145
        %p341 = pneg %p142
        %p342 = pneg %p166
        %p343 = pneg %p163
        %p344 = pneg %p187
        %p345 = pneg %p184
        %p346 = pneg %p213
        %p347 = pneg %p210
        %s348 = sand.u32 %s200, 1
        %s349 = scalar_lea.sflag [#allocation5], %s348
        %s350 = sand.u32 %s200, 1
        %s351 = scalar_lea.vmem [#allocation11], %s350
        %s352 = smul.u32 2, %s31
        %p354 = scmp.eq.s32.totalorder %s31, 0
        // Predicated region
        $region65: #{tpu_custom_call.1} parent=47 // pred_check
          %p355 = pneg %p354
        $region66: #{tpu_custom_call.1} parent=47 // pred_check_branch
          %357 = sbr.rel (%p355) target = $region68
        $region67: #{tpu_custom_call.1} parent=47 // pred_region
          %v358 = vlaneseq
          %vm359 = vcmp.ge.s32.totalorder %v358, 0
          %vm360 = vcmp.lt.s32.totalorder %v358, 512
          %vm361 = vmand %vm359, %vm360
          %362 = vst.msk [vmem:[#allocation2] sm:$0xf] %vm361, 0.0
        $region68: #{tpu_custom_call.1} parent=47 // pred_fallthru
          _
        %v363 = vld [vmem:[#allocation6] sm:$0xff]
        %v364 = vld [vmem:[%s2] sm:$0xf]
        %v365 = vld [vmem:[%s310] sm:$0xf]
        %v366 = vpack.c.bf16 %v365, %v365
        %v368 = vlaneseq
        %v369 = vshrl.u32 %v368, 7
        %v370 = vsub.s32 0, %v369
        %v371 = vrot.slane %v364, %v370
        %v372 = vlaneseq
        %v373 = vshrl.u32 %v372, 7
        %v374 = vsub.s32 1, %v373
        %v375 = vrot.slane %v364, %v374
        %v376 = vlaneseq
        %v377 = vshrl.u32 %v376, 7
        %v378 = vsub.s32 2, %v377
        %v379 = vrot.slane %v364, %v378
        %v380 = vlaneseq
        %v381 = vshrl.u32 %v380, 7
        %v382 = vsub.s32 3, %v381
        %v383 = vrot.slane %v364, %v382
        %388 = vxpose.xlu0.c.b16.start [1/8] %v366, 128
        %389 = vxpose.xlu0.c.b16.cont [2/8] 0, 128
        %390 = vxpose.xlu0.c.b16.cont [3/8] 0, 128
        %391 = vxpose.xlu0.c.b16.cont [4/8] 0, 128
        %392 = vxpose.xlu0.c.b16.cont [5/8] 0, 128
        %393 = vxpose.xlu0.c.b16.cont [6/8] 0, 128
        %394 = vxpose.xlu0.c.b16.cont [7/8] 0, 128
        %395 = vxpose.xlu0.c.b16.end [8/8] 0, 128
        %v396 = vpop.trf.xlu0
        %v397 = vpop.trf.xlu0
        %v398 = vpop.trf.xlu0
        %v399 = vpop.trf.xlu0
        %v400 = vpop.trf.xlu0
        %v401 = vpop.trf.xlu0
        %v402 = vpop.trf.xlu0
        %v403 = vpop.trf.xlu0
        %v405 = vcombine.high %v363, %v363
        %v407 = vunpack.c.l.s4 1983009808
        %v408 = vunpack.c.0.s8 %v407
        %v409 = vlaneseq
        %v410 = vshrl.u32 %v409, 7
        %v411 = vsub.s32 %v408, %v410
        %v412 = vrot.slane %v363, %v411
        %v414 = vunpack.c.l.s4 1983009808
        %v415 = vunpack.c.0.s8 %v414
        %v416 = vlaneseq
        %v417 = vshrl.u32 %v416, 7
        %v418 = vsub.s32 %v415, %v417
        %v419 = vrot.slane %v405, %v418
        %v420 = vcombine.high %v412, %v412
        %v421 = vcombine.high %v419, %v419
        %vm422 = vcmask 31744
        %v424 = vsel %vm422, %v396, 0
        %v427 = vsel %vm422, %v397, 0
        %v430 = vsel %vm422, %v398, 0
        %v433 = vsel %vm422, %v399, 0
        %v436 = vsel %vm422, %v400, 0
        %v439 = vsel %vm422, %v401, 0
        %v442 = vsel %vm422, %v402, 0
        %v445 = vsel %vm422, %v403, 0
        %vm447 = vcmask 1041408
        %v449 = vsel %vm447, %v412, 0
        %v452 = vsel %vm447, %v420, 0
        %v455 = vsel %vm447, %v419, 0
        %v458 = vsel %vm447, %v421, 0
        %460 = vmatprep.subr.bf16.mxu0 %v452
        %461 = vmatpush1.bf16.msra.mxu0 %v449
        %462 = vmatprep.subr.bf16.mxu0 0
        %463 = vmatpush1.bf16.msra.mxu0 0
        %464 = vmatprep.subr.bf16.mxu0 0
        %465 = vmatpush1.bf16.msra.mxu0 0
        %466 = vmatprep.subr.bf16.mxu0 0
        %467 = vmatpush1.bf16.msra.mxu0 0
        %468 = vmatprep.subr.bf16.mxu0 0
        %469 = vmatpush1.bf16.msra.mxu0 0
        %470 = vmatprep.subr.bf16.mxu0 0
        %471 = vmatpush1.bf16.msra.mxu0 0
        %472 = vmatprep.subr.bf16.mxu0 0
        %473 = vmatpush1.bf16.msra.mxu0 0
        %474 = vmatprep.subr.bf16.mxu0 0
        %475 = vmatpush1.bf16.msra.mxu0 0
        %476 = vmatprep.subr.bf16.mxu0 0
        %477 = vmatpush1.bf16.msra.mxu0 0
        %478 = vmatprep.subr.bf16.mxu0 0
        %479 = vmatpush1.bf16.msra.mxu0 0
        %480 = vmatprep.subr.bf16.mxu0 0
        %481 = vmatpush1.bf16.msra.mxu0 0
        %482 = vmatprep.subr.bf16.mxu0 0
        %483 = vmatpush1.bf16.msra.mxu0 0
        %484 = vmatprep.subr.bf16.mxu0 0
        %485 = vmatpush1.bf16.msra.mxu0 0
        %486 = vmatprep.subr.bf16.mxu0 0
        %487 = vmatpush1.bf16.msra.mxu0 0
        %488 = vmatprep.subr.bf16.mxu0 0
        %489 = vmatpush1.bf16.msra.mxu0 0
        %490 = vmatprep.subr.bf16.mxu0 0
        %491 = vmatpush1.bf16.msra.mxu0 0
        %492 = vmatprep.mubr.bf16.mxu0 0
        %493 = vmatmul.mubr.bf16.gmra.mrb[0].mxu0 %v424
        %v494 = vpop.f32.mrb[0].mxu0
        %v495 = vadd.f32 %v371, %v494
        %v496 = vpop.f32.mrb[0].mxu0
        %v497 = vadd.f32 %v375, %v496
        %v498 = vpop.f32.mrb[0].mxu0
        %v499 = vadd.f32 %v371, %v498
        %v500 = vpop.f32.mrb[0].mxu0
        %v501 = vadd.f32 %v375, %v500
        %502 = vmatprep.mubr.bf16.mxu0 0
        %503 = vmatmul.mubr.bf16.gmra.mrb[0].mxu0 %v427
        %v504 = vpop.f32.mrb[0].mxu0
        %v505 = vadd.f32 %v371, %v504
        %v506 = vpop.f32.mrb[0].mxu0
        %v507 = vadd.f32 %v375, %v506
        %v508 = vpop.f32.mrb[0].mxu0
        %v509 = vadd.f32 %v371, %v508
        %v510 = vpop.f32.mrb[0].mxu0
        %v511 = vadd.f32 %v375, %v510
        %512 = vmatprep.mubr.bf16.mxu0 0
        %513 = vmatmul.mubr.bf16.gmra.mrb[0].mxu0 %v430
        %v514 = vpop.f32.mrb[0].mxu0
        %v515 = vadd.f32 %v371, %v514
        %v516 = vpop.f32.mrb[0].mxu0
        %v517 = vadd.f32 %v375, %v516
        %v518 = vpop.f32.mrb[0].mxu0
        %v519 = vadd.f32 %v371, %v518
        %v520 = vpop.f32.mrb[0].mxu0
        %v521 = vadd.f32 %v375, %v520
        %522 = vmatprep.mubr.bf16.mxu0 0
        %523 = vmatmul.mubr.bf16.gmra.mrb[0].mxu0 %v433
        %v524 = vpop.f32.mrb[0].mxu0
        %v525 = vadd.f32 %v371, %v524
        %v526 = vpop.f32.mrb[0].mxu0
        %v527 = vadd.f32 %v375, %v526
        %v528 = vpop.f32.mrb[0].mxu0
        %v529 = vadd.f32 %v371, %v528
        %v530 = vpop.f32.mrb[0].mxu0
        %v531 = vadd.f32 %v375, %v530
        %532 = vmatprep.mubr.bf16.mxu0 0
        %533 = vmatmul.mubr.bf16.gmra.mrb[0].mxu0 %v436
        %v534 = vpop.f32.mrb[0].mxu0
        %v535 = vadd.f32 %v371, %v534
        %v536 = vpop.f32.mrb[0].mxu0
        %v537 = vadd.f32 %v375, %v536
        %v538 = vpop.f32.mrb[0].mxu0
        %v539 = vadd.f32 %v371, %v538
        %v540 = vpop.f32.mrb[0].mxu0
        %v541 = vadd.f32 %v375, %v540
        %542 = vmatprep.mubr.bf16.mxu0 0
        %543 = vmatmul.mubr.bf16.gmra.mrb[0].mxu0 %v439
        %v544 = vpop.f32.mrb[0].mxu0
        %v545 = vadd.f32 %v371, %v544
        %v546 = vpop.f32.mrb[0].mxu0
        %v547 = vadd.f32 %v375, %v546
        %v548 = vpop.f32.mrb[0].mxu0
        %v549 = vadd.f32 %v371, %v548
        %v550 = vpop.f32.mrb[0].mxu0
        %v551 = vadd.f32 %v375, %v550
        %552 = vmatprep.mubr.bf16.mxu0 0
        %553 = vmatmul.mubr.bf16.gmra.mrb[0].mxu0 %v442
        %v554 = vpop.f32.mrb[0].mxu0
        %v555 = vadd.f32 %v371, %v554
        %v556 = vpop.f32.mrb[0].mxu0
        %v557 = vadd.f32 %v375, %v556
        %v558 = vpop.f32.mrb[0].mxu0
        %v559 = vadd.f32 %v371, %v558
        %v560 = vpop.f32.mrb[0].mxu0
        %v561 = vadd.f32 %v375, %v560
        %562 = vmatprep.mubr.bf16.mxu0 0
        %563 = vmatmul.mubr.bf16.gmra.mrb[0].mxu0 %v445
        %v564 = vpop.f32.mrb[0].mxu0
        %v565 = vadd.f32 %v371, %v564
        %v566 = vpop.f32.mrb[0].mxu0
        %v567 = vadd.f32 %v375, %v566
        %v568 = vpop.f32.mrb[0].mxu0
        %v569 = vadd.f32 %v371, %v568
        %v570 = vpop.f32.mrb[0].mxu0
        %v571 = vadd.f32 %v375, %v570
        %572 = vdwg.mxu0
        %573 = vmatprep.subr.bf16.mxu0 %v458
        %574 = vmatpush1.bf16.msra.mxu0 %v455
        %575 = vmatprep.subr.bf16.mxu0 0
        %576 = vmatpush1.bf16.msra.mxu0 0
        %577 = vmatprep.subr.bf16.mxu0 0
        %578 = vmatpush1.bf16.msra.mxu0 0
        %579 = vmatprep.subr.bf16.mxu0 0
        %580 = vmatpush1.bf16.msra.mxu0 0
        %581 = vmatprep.subr.bf16.mxu0 0
        %582 = vmatpush1.bf16.msra.mxu0 0
        %583 = vmatprep.subr.bf16.mxu0 0
        %584 = vmatpush1.bf16.msra.mxu0 0
        %585 = vmatprep.subr.bf16.mxu0 0
        %586 = vmatpush1.bf16.msra.mxu0 0
        %587 = vmatprep.subr.bf16.mxu0 0
        %588 = vmatpush1.bf16.msra.mxu0 0
        %589 = vmatprep.subr.bf16.mxu0 0
        %590 = vmatpush1.bf16.msra.mxu0 0
        %591 = vmatprep.subr.bf16.mxu0 0
        %592 = vmatpush1.bf16.msra.mxu0 0
        %593 = vmatprep.subr.bf16.mxu0 0
        %594 = vmatpush1.bf16.msra.mxu0 0
        %595 = vmatprep.subr.bf16.mxu0 0
        %596 = vmatpush1.bf16.msra.mxu0 0
        %597 = vmatprep.subr.bf16.mxu0 0
        %598 = vmatpush1.bf16.msra.mxu0 0
        %599 = vmatprep.subr.bf16.mxu0 0
        %600 = vmatpush1.bf16.msra.mxu0 0
        %601 = vmatprep.subr.bf16.mxu0 0
        %602 = vmatpush1.bf16.msra.mxu0 0
        %603 = vmatprep.subr.bf16.mxu0 0
        %604 = vmatpush1.bf16.msra.mxu0 0
        %605 = vmatprep.mubr.bf16.mxu0 0
        %606 = vmatmul.mubr.bf16.gmra.mrb[0].mxu0 %v424
        %v607 = vpop.f32.mrb[0].mxu0
        %v608 = vadd.f32 %v379, %v607
        %v609 = vpop.f32.mrb[0].mxu0
        %v610 = vadd.f32 %v383, %v609
        %v611 = vpop.f32.mrb[0].mxu0
        %v612 = vadd.f32 %v379, %v611
        %v613 = vpop.f32.mrb[0].mxu0
        %v614 = vadd.f32 %v383, %v613
        %615 = vmatprep.mubr.bf16.mxu0 0
        %616 = vmatmul.mubr.bf16.gmra.mrb[0].mxu0 %v427
        %v617 = vpop.f32.mrb[0].mxu0
        %v618 = vadd.f32 %v379, %v617
        %v619 = vpop.f32.mrb[0].mxu0
        %v620 = vadd.f32 %v383, %v619
        %v621 = vpop.f32.mrb[0].mxu0
        %v622 = vadd.f32 %v379, %v621
        %v623 = vpop.f32.mrb[0].mxu0
        %v624 = vadd.f32 %v383, %v623
        %625 = vmatprep.mubr.bf16.mxu0 0
        %626 = vmatmul.mubr.bf16.gmra.mrb[0].mxu0 %v430
        %v627 = vpop.f32.mrb[0].mxu0
        %v628 = vadd.f32 %v379, %v627
        %v629 = vpop.f32.mrb[0].mxu0
        %v630 = vadd.f32 %v383, %v629
        %v631 = vpop.f32.mrb[0].mxu0
        %v632 = vadd.f32 %v379, %v631
        %v633 = vpop.f32.mrb[0].mxu0
        %v634 = vadd.f32 %v383, %v633
        %635 = vmatprep.mubr.bf16.mxu0 0
        %636 = vmatmul.mubr.bf16.gmra.mrb[0].mxu0 %v433
        %v637 = vpop.f32.mrb[0].mxu0
        %v638 = vadd.f32 %v379, %v637
        %v639 = vpop.f32.mrb[0].mxu0
        %v640 = vadd.f32 %v383, %v639
        %v641 = vpop.f32.mrb[0].mxu0
        %v642 = vadd.f32 %v379, %v641
        %v643 = vpop.f32.mrb[0].mxu0
        %v644 = vadd.f32 %v383, %v643
        %645 = vmatprep.mubr.bf16.mxu0 0
        %646 = vmatmul.mubr.bf16.gmra.mrb[0].mxu0 %v436
        %v647 = vpop.f32.mrb[0].mxu0
        %v648 = vadd.f32 %v379, %v647
        %v649 = vpop.f32.mrb[0].mxu0
        %v650 = vadd.f32 %v383, %v649
        %v651 = vpop.f32.mrb[0].mxu0
        %v652 = vadd.f32 %v379, %v651
        %v653 = vpop.f32.mrb[0].mxu0
        %v654 = vadd.f32 %v383, %v653
        %655 = vmatprep.mubr.bf16.mxu0 0
        %656 = vmatmul.mubr.bf16.gmra.mrb[0].mxu0 %v439
        %v657 = vpop.f32.mrb[0].mxu0
        %v658 = vadd.f32 %v379, %v657
        %v659 = vpop.f32.mrb[0].mxu0
        %v660 = vadd.f32 %v383, %v659
        %v661 = vpop.f32.mrb[0].mxu0
        %v662 = vadd.f32 %v379, %v661
        %v663 = vpop.f32.mrb[0].mxu0
        %v664 = vadd.f32 %v383, %v663
        %665 = vmatprep.mubr.bf16.mxu0 0
        %666 = vmatmul.mubr.bf16.gmra.mrb[0].mxu0 %v442
        %v667 = vpop.f32.mrb[0].mxu0
        %v668 = vadd.f32 %v379, %v667
        %v669 = vpop.f32.mrb[0].mxu0
        %v670 = vadd.f32 %v383, %v669
        %v671 = vpop.f32.mrb[0].mxu0
        %v672 = vadd.f32 %v379, %v671
        %v673 = vpop.f32.mrb[0].mxu0
        %v674 = vadd.f32 %v383, %v673
        %675 = vmatprep.mubr.bf16.mxu0 0
        %676 = vmatmul.mubr.bf16.gmra.mrb[0].mxu0 %v445
        %v677 = vpop.f32.mrb[0].mxu0
        %v678 = vadd.f32 %v379, %v677
        %v679 = vpop.f32.mrb[0].mxu0
        %v680 = vadd.f32 %v383, %v679
        %v681 = vpop.f32.mrb[0].mxu0
        %v682 = vadd.f32 %v379, %v681
        %v683 = vpop.f32.mrb[0].mxu0
        %v684 = vadd.f32 %v383, %v683
        %685 = vdwg.mxu0
        %v686 = vmax.f32 %v495, 0.0
        %v687 = vmax.f32 %v497, 0.0
        %v688 = vmax.f32 %v608, 0.0
        %v689 = vmax.f32 %v610, 0.0
        %v690 = vmax.f32 %v499, 0.0
        %v691 = vmax.f32 %v501, 0.0
        %v692 = vmax.f32 %v612, 0.0
        %v693 = vmax.f32 %v614, 0.0
        %v694 = vmax.f32 %v505, 0.0
        %v695 = vmax.f32 %v507, 0.0
        %v696 = vmax.f32 %v618, 0.0
        %v697 = vmax.f32 %v620, 0.0
        %v698 = vmax.f32 %v509, 0.0
        %v699 = vmax.f32 %v511, 0.0
        %v700 = vmax.f32 %v622, 0.0
        %v701 = vmax.f32 %v624, 0.0
        %v702 = vmax.f32 %v515, 0.0
        %v703 = vmax.f32 %v517, 0.0
        %v704 = vmax.f32 %v628, 0.0
        %v705 = vmax.f32 %v630, 0.0
        %v706 = vmax.f32 %v519, 0.0
        %v707 = vmax.f32 %v521, 0.0
        %v708 = vmax.f32 %v632, 0.0
        %v709 = vmax.f32 %v634, 0.0
        %v710 = vmax.f32 %v525, 0.0
        %v711 = vmax.f32 %v527, 0.0
        %v712 = vmax.f32 %v638, 0.0
        %v713 = vmax.f32 %v640, 0.0
        %v714 = vmax.f32 %v529, 0.0
        %v715 = vmax.f32 %v531, 0.0
        %v716 = vmax.f32 %v642, 0.0
        %v717 = vmax.f32 %v644, 0.0
        %v718 = vmax.f32 %v535, 0.0
        %v719 = vmax.f32 %v537, 0.0
        %v720 = vmax.f32 %v648, 0.0
        %v721 = vmax.f32 %v650, 0.0
        %v722 = vmax.f32 %v539, 0.0
        %v723 = vmax.f32 %v541, 0.0
        %v724 = vmax.f32 %v652, 0.0
        %v725 = vmax.f32 %v654, 0.0
        %v726 = vmax.f32 %v545, 0.0
        %v727 = vmax.f32 %v547, 0.0
        %v728 = vmax.f32 %v658, 0.0
        %v729 = vmax.f32 %v660, 0.0
        %v730 = vmax.f32 %v549, 0.0
        %v731 = vmax.f32 %v551, 0.0
        %v732 = vmax.f32 %v662, 0.0
        %v733 = vmax.f32 %v664, 0.0
        %v734 = vmax.f32 %v555, 0.0
        %v735 = vmax.f32 %v557, 0.0
        %v736 = vmax.f32 %v668, 0.0
        %v737 = vmax.f32 %v670, 0.0
        %v738 = vmax.f32 %v559, 0.0
        %v739 = vmax.f32 %v561, 0.0
        %v740 = vmax.f32 %v672, 0.0
        %v741 = vmax.f32 %v674, 0.0
        %v742 = vmax.f32 %v565, 0.0
        %v743 = vmax.f32 %v567, 0.0
        %v744 = vmax.f32 %v678, 0.0
        %v745 = vmax.f32 %v680, 0.0
        %v746 = vmax.f32 %v569, 0.0
        %v747 = vmax.f32 %v571, 0.0
        %v748 = vmax.f32 %v682, 0.0
        %v749 = vmax.f32 %v684, 0.0
        %v750 = vadd.f32 %v686, %v690
        %v751 = vadd.f32 %v750, %v694
        %v752 = vadd.f32 %v751, %v698
        %v753 = vadd.f32 %v752, %v702
        %v754 = vadd.f32 %v753, %v706
        %v755 = vadd.f32 %v754, %v710
        %v756 = vadd.f32 %v755, %v714
        %v757 = vadd.f32 %v756, %v718
        %v758 = vadd.f32 %v757, %v722
        %v759 = vadd.f32 %v758, %v726
        %v760 = vadd.f32 %v759, %v730
        %v761 = vadd.f32 %v760, %v734
        %v762 = vadd.f32 %v761, %v738
        %v763 = vadd.f32 %v762, %v742
        %v764 = vadd.f32 %v763, %v746
        %v765 = vrot.slane %v764, 4
        %v766 = vadd.f32 %v764, %v765
        %v767 = vrot.slane %v766, 2
        %v768 = vadd.f32 %v766, %v767
        %v769 = vrot.slane %v768, 1
        %v770 = vadd.f32 %v768, %v769
        %v771 = vadd.f32 %v687, %v691
        %v772 = vadd.f32 %v771, %v695
        %v773 = vadd.f32 %v772, %v699
        %v774 = vadd.f32 %v773, %v703
        %v775 = vadd.f32 %v774, %v707
        %v776 = vadd.f32 %v775, %v711
        %v777 = vadd.f32 %v776, %v715
        %v778 = vadd.f32 %v777, %v719
        %v779 = vadd.f32 %v778, %v723
        %v780 = vadd.f32 %v779, %v727
        %v781 = vadd.f32 %v780, %v731
        %v782 = vadd.f32 %v781, %v735
        %v783 = vadd.f32 %v782, %v739
        %v784 = vadd.f32 %v783, %v743
        %v785 = vadd.f32 %v784, %v747
        %v786 = vrot.slane %v785, 4
        %v787 = vadd.f32 %v785, %v786
        %v788 = vrot.slane %v787, 2
        %v789 = vadd.f32 %v787, %v788
        %v790 = vrot.slane %v789, 1
        %v791 = vadd.f32 %v789, %v790
        %v792 = vadd.f32 %v688, %v692
        %v793 = vadd.f32 %v792, %v696
        %v794 = vadd.f32 %v793, %v700
        %v795 = vadd.f32 %v794, %v704
        %v796 = vadd.f32 %v795, %v708
        %v797 = vadd.f32 %v796, %v712
        %v798 = vadd.f32 %v797, %v716
        %v799 = vadd.f32 %v798, %v720
        %v800 = vadd.f32 %v799, %v724
        %v801 = vadd.f32 %v800, %v728
        %v802 = vadd.f32 %v801, %v732
        %v803 = vadd.f32 %v802, %v736
        %v804 = vadd.f32 %v803, %v740
        %v805 = vadd.f32 %v804, %v744
        %v806 = vadd.f32 %v805, %v748
        %v807 = vrot.slane %v806, 4
        %v808 = vadd.f32 %v806, %v807
        %v809 = vrot.slane %v808, 2
        %v810 = vadd.f32 %v808, %v809
        %v811 = vrot.slane %v810, 1
        %v812 = vadd.f32 %v810, %v811
        %v813 = vadd.f32 %v689, %v693
        %v814 = vadd.f32 %v813, %v697
        %v815 = vadd.f32 %v814, %v701
        %v816 = vadd.f32 %v815, %v705
        %v817 = vadd.f32 %v816, %v709
        %v818 = vadd.f32 %v817, %v713
        %v819 = vadd.f32 %v818, %v717
        %v820 = vadd.f32 %v819, %v721
        %v821 = vadd.f32 %v820, %v725
        %v822 = vadd.f32 %v821, %v729
        %v823 = vadd.f32 %v822, %v733
        %v824 = vadd.f32 %v823, %v737
        %v825 = vadd.f32 %v824, %v741
        %v826 = vadd.f32 %v825, %v745
        %v827 = vadd.f32 %v826, %v749
        %v828 = vrot.slane %v827, 4
        %v829 = vadd.f32 %v827, %v828
        %v830 = vrot.slane %v829, 2
        %v831 = vadd.f32 %v829, %v830
        %v832 = vrot.slane %v831, 1
        %v833 = vadd.f32 %v831, %v832
        %v834 = vadd.f32 %v770, 0.0
        %v835 = vadd.f32 %v791, 0.0
        %v836 = vadd.f32 %v812, 0.0
        %v837 = vadd.f32 %v833, 0.0
        %v838 = vld [vmem:[%s310 + $0x4] sm:$0xf]
        %v839 = vpack.c.bf16 %v838, %v838
        %840 = vxpose.xlu0.c.b16.start [1/8] %v839, 128
        %841 = vxpose.xlu0.c.b16.cont [2/8] 0, 128
        %842 = vxpose.xlu0.c.b16.cont [3/8] 0, 128
        %843 = vxpose.xlu0.c.b16.cont [4/8] 0, 128
        %844 = vxpose.xlu0.c.b16.cont [5/8] 0, 128
        %845 = vxpose.xlu0.c.b16.cont [6/8] 0, 128
        %846 = vxpose.xlu0.c.b16.cont [7/8] 0, 128
        %847 = vxpose.xlu0.c.b16.end [8/8] 0, 128
        %v848 = vpop.trf.xlu0
        %v849 = vpop.trf.xlu0
        %v850 = vpop.trf.xlu0
        %v851 = vpop.trf.xlu0
        %v852 = vpop.trf.xlu0
        %v853 = vpop.trf.xlu0
        %v854 = vpop.trf.xlu0
        %v855 = vpop.trf.xlu0
        %v857 = vsel %vm422, %v848, 0
        %v860 = vsel %vm422, %v849, 0
        %v863 = vsel %vm422, %v850, 0
        %v866 = vsel %vm422, %v851, 0
        %v869 = vsel %vm422, %v852, 0
        %v872 = vsel %vm422, %v853, 0
        %v875 = vsel %vm422, %v854, 0
        %v878 = vsel %vm422, %v855, 0
        %880 = vmatprep.subr.bf16.mxu0 %v452
        %881 = vmatpush1.bf16.msra.mxu0 %v449
        %882 = vmatprep.subr.bf16.mxu0 0
        %883 = vmatpush1.bf16.msra.mxu0 0
        %884 = vmatprep.subr.bf16.mxu0 0
        %885 = vmatpush1.bf16.msra.mxu0 0
        %886 = vmatprep.subr.bf16.mxu0 0
        %887 = vmatpush1.bf16.msra.mxu0 0
        %888 = vmatprep.subr.bf16.mxu0 0
        %889 = vmatpush1.bf16.msra.mxu0 0
        %890 = vmatprep.subr.bf16.mxu0 0
        %891 = vmatpush1.bf16.msra.mxu0 0
        %892 = vmatprep.subr.bf16.mxu0 0
        %893 = vmatpush1.bf16.msra.mxu0 0
        %894 = vmatprep.subr.bf16.mxu0 0
        %895 = vmatpush1.bf16.msra.mxu0 0
        %896 = vmatprep.subr.bf16.mxu0 0
        %897 = vmatpush1.bf16.msra.mxu0 0
        %898 = vmatprep.subr.bf16.mxu0 0
        %899 = vmatpush1.bf16.msra.mxu0 0
        %900 = vmatprep.subr.bf16.mxu0 0
        %901 = vmatpush1.bf16.msra.mxu0 0
        %902 = vmatprep.subr.bf16.mxu0 0
        %903 = vmatpush1.bf16.msra.mxu0 0
        %904 = vmatprep.subr.bf16.mxu0 0
        %905 = vmatpush1.bf16.msra.mxu0 0
        %906 = vmatprep.subr.bf16.mxu0 0
        %907 = vmatpush1.bf16.msra.mxu0 0
        %908 = vmatprep.subr.bf16.mxu0 0
        %909 = vmatpush1.bf16.msra.mxu0 0
        %910 = vmatprep.subr.bf16.mxu0 0
        %911 = vmatpush1.bf16.msra.mxu0 0
        %912 = vmatprep.mubr.bf16.mxu0 0
        %913 = vmatmul.mubr.bf16.gmra.mrb[0].mxu0 %v857
        %v914 = vpop.f32.mrb[0].mxu0
        %v915 = vadd.f32 %v371, %v914
        %v916 = vpop.f32.mrb[0].mxu0
        %v917 = vadd.f32 %v375, %v916
        %v918 = vpop.f32.mrb[0].mxu0
        %v919 = vadd.f32 %v371, %v918
        %v920 = vpop.f32.mrb[0].mxu0
        %v921 = vadd.f32 %v375, %v920
        %922 = vmatprep.mubr.bf16.mxu0 0
        %923 = vmatmul.mubr.bf16.gmra.mrb[0].mxu0 %v860
        %v924 = vpop.f32.mrb[0].mxu0
        %v925 = vadd.f32 %v371, %v924
        %v926 = vpop.f32.mrb[0].mxu0
        %v927 = vadd.f32 %v375, %v926
        %v928 = vpop.f32.mrb[0].mxu0
        %v929 = vadd.f32 %v371, %v928
        %v930 = vpop.f32.mrb[0].mxu0
        %v931 = vadd.f32 %v375, %v930
        %932 = vmatprep.mubr.bf16.mxu0 0
        %933 = vmatmul.mubr.bf16.gmra.mrb[0].mxu0 %v863
        %v934 = vpop.f32.mrb[0].mxu0
        %v935 = vadd.f32 %v371, %v934
        %v936 = vpop.f32.mrb[0].mxu0
        %v937 = vadd.f32 %v375, %v936
        %v938 = vpop.f32.mrb[0].mxu0
        %v939 = vadd.f32 %v371, %v938
        %v940 = vpop.f32.mrb[0].mxu0
        %v941 = vadd.f32 %v375, %v940
        %942 = vmatprep.mubr.bf16.mxu0 0
        %943 = vmatmul.mubr.bf16.gmra.mrb[0].mxu0 %v866
        %v944 = vpop.f32.mrb[0].mxu0
        %v945 = vadd.f32 %v371, %v944
        %v946 = vpop.f32.mrb[0].mxu0
        %v947 = vadd.f32 %v375, %v946
        %v948 = vpop.f32.mrb[0].mxu0
        %v949 = vadd.f32 %v371, %v948
        %v950 = vpop.f32.mrb[0].mxu0
        %v951 = vadd.f32 %v375, %v950
        %952 = vmatprep.mubr.bf16.mxu0 0
        %953 = vmatmul.mubr.bf16.gmra.mrb[0].mxu0 %v869
        %v954 = vpop.f32.mrb[0].mxu0
        %v955 = vadd.f32 %v371, %v954
        %v956 = vpop.f32.mrb[0].mxu0
        %v957 = vadd.f32 %v375, %v956
        %v958 = vpop.f32.mrb[0].mxu0
        %v959 = vadd.f32 %v371, %v958
        %v960 = vpop.f32.mrb[0].mxu0
        %v961 = vadd.f32 %v375, %v960
        %962 = vmatprep.mubr.bf16.mxu0 0
        %963 = vmatmul.mubr.bf16.gmra.mrb[0].mxu0 %v872
        %v964 = vpop.f32.mrb[0].mxu0
        %v965 = vadd.f32 %v371, %v964
        %v966 = vpop.f32.mrb[0].mxu0
        %v967 = vadd.f32 %v375, %v966
        %v968 = vpop.f32.mrb[0].mxu0
        %v969 = vadd.f32 %v371, %v968
        %v970 = vpop.f32.mrb[0].mxu0
        %v971 = vadd.f32 %v375, %v970
        %972 = vmatprep.mubr.bf16.mxu0 0
        %973 = vmatmul.mubr.bf16.gmra.mrb[0].mxu0 %v875
        %v974 = vpop.f32.mrb[0].mxu0
        %v975 = vadd.f32 %v371, %v974
        %v976 = vpop.f32.mrb[0].mxu0
        %v977 = vadd.f32 %v375, %v976
        %v978 = vpop.f32.mrb[0].mxu0
        %v979 = vadd.f32 %v371, %v978
        %v980 = vpop.f32.mrb[0].mxu0
        %v981 = vadd.f32 %v375, %v980
        %982 = vmatprep.mubr.bf16.mxu0 0
        %983 = vmatmul.mubr.bf16.gmra.mrb[0].mxu0 %v878
        %v984 = vpop.f32.mrb[0].mxu0
        %v985 = vadd.f32 %v371, %v984
        %v986 = vpop.f32.mrb[0].mxu0
        %v987 = vadd.f32 %v375, %v986
        %v988 = vpop.f32.mrb[0].mxu0
        %v989 = vadd.f32 %v371, %v988
        %v990 = vpop.f32.mrb[0].mxu0
        %v991 = vadd.f32 %v375, %v990
        %992 = vdwg.mxu0
        %993 = vmatprep.subr.bf16.mxu0 %v458
        %994 = vmatpush1.bf16.msra.mxu0 %v455
        %995 = vmatprep.subr.bf16.mxu0 0
        %996 = vmatpush1.bf16.msra.mxu0 0
        %997 = vmatprep.subr.bf16.mxu0 0
        %998 = vmatpush1.bf16.msra.mxu0 0
        %999 = vmatprep.subr.bf16.mxu0 0
        %1000 = vmatpush1.bf16.msra.mxu0 0
        %1001 = vmatprep.subr.bf16.mxu0 0
        %1002 = vmatpush1.bf16.msra.mxu0 0
        %1003 = vmatprep.subr.bf16.mxu0 0
        %1004 = vmatpush1.bf16.msra.mxu0 0
        %1005 = vmatprep.subr.bf16.mxu0 0
        %1006 = vmatpush1.bf16.msra.mxu0 0
        %1007 = vmatprep.subr.bf16.mxu0 0
        %1008 = vmatpush1.bf16.msra.mxu0 0
        %1009 = vmatprep.subr.bf16.mxu0 0
        %1010 = vmatpush1.bf16.msra.mxu0 0
        %1011 = vmatprep.subr.bf16.mxu0 0
        %1012 = vmatpush1.bf16.msra.mxu0 0
        %1013 = vmatprep.subr.bf16.mxu0 0
        %1014 = vmatpush1.bf16.msra.mxu0 0
        %1015 = vmatprep.subr.bf16.mxu0 0
        %1016 = vmatpush1.bf16.msra.mxu0 0
        %1017 = vmatprep.subr.bf16.mxu0 0
        %1018 = vmatpush1.bf16.msra.mxu0 0
        %1019 = vmatprep.subr.bf16.mxu0 0
        %1020 = vmatpush1.bf16.msra.mxu0 0
        %1021 = vmatprep.subr.bf16.mxu0 0
        %1022 = vmatpush1.bf16.msra.mxu0 0
        %1023 = vmatprep.subr.bf16.mxu0 0
        %1024 = vmatpush1.bf16.msra.mxu0 0
        %1025 = vmatprep.mubr.bf16.mxu0 0
        %1026 = vmatmul.mubr.bf16.gmra.mrb[0].mxu0 %v857
        %v1027 = vpop.f32.mrb[0].mxu0
        %v1028 = vadd.f32 %v379, %v1027
        %v1029 = vpop.f32.mrb[0].mxu0
        %v1030 = vadd.f32 %v383, %v1029
        %v1031 = vpop.f32.mrb[0].mxu0
        %v1032 = vadd.f32 %v379, %v1031
        %v1033 = vpop.f32.mrb[0].mxu0
        %v1034 = vadd.f32 %v383, %v1033
        %1035 = vmatprep.mubr.bf16.mxu0 0
        %1036 = vmatmul.mubr.bf16.gmra.mrb[0].mxu0 %v860
        %v1037 = vpop.f32.mrb[0].mxu0
        %v1038 = vadd.f32 %v379, %v1037
        %v1039 = vpop.f32.mrb[0].mxu0
        %v1040 = vadd.f32 %v383, %v1039
        %v1041 = vpop.f32.mrb[0].mxu0
        %v1042 = vadd.f32 %v379, %v1041
        %v1043 = vpop.f32.mrb[0].mxu0
        %v1044 = vadd.f32 %v383, %v1043
        %1045 = vmatprep.mubr.bf16.mxu0 0
        %1046 = vmatmul.mubr.bf16.gmra.mrb[0].mxu0 %v863
        %v1047 = vpop.f32.mrb[0].mxu0
        %v1048 = vadd.f32 %v379, %v1047
        %v1049 = vpop.f32.mrb[0].mxu0
        %v1050 = vadd.f32 %v383, %v1049
        %v1051 = vpop.f32.mrb[0].mxu0
        %v1052 = vadd.f32 %v379, %v1051
        %v1053 = vpop.f32.mrb[0].mxu0
        %v1054 = vadd.f32 %v383, %v1053
        %1055 = vmatprep.mubr.bf16.mxu0 0
        %1056 = vmatmul.mubr.bf16.gmra.mrb[0].mxu0 %v866
        %v1057 = vpop.f32.mrb[0].mxu0
        %v1058 = vadd.f32 %v379, %v1057
        %v1059 = vpop.f32.mrb[0].mxu0
        %v1060 = vadd.f32 %v383, %v1059
        %v1061 = vpop.f32.mrb[0].mxu0
        %v1062 = vadd.f32 %v379, %v1061
        %v1063 = vpop.f32.mrb[0].mxu0
        %v1064 = vadd.f32 %v383, %v1063
        %1065 = vmatprep.mubr.bf16.mxu0 0
        %1066 = vmatmul.mubr.bf16.gmra.mrb[0].mxu0 %v869
        %v1067 = vpop.f32.mrb[0].mxu0
        %v1068 = vadd.f32 %v379, %v1067
        %v1069 = vpop.f32.mrb[0].mxu0
        %v1070 = vadd.f32 %v383, %v1069
        %v1071 = vpop.f32.mrb[0].mxu0
        %v1072 = vadd.f32 %v379, %v1071
        %v1073 = vpop.f32.mrb[0].mxu0
        %v1074 = vadd.f32 %v383, %v1073
        %1075 = vmatprep.mubr.bf16.mxu0 0
        %1076 = vmatmul.mubr.bf16.gmra.mrb[0].mxu0 %v872
        %v1077 = vpop.f32.mrb[0].mxu0
        %v1078 = vadd.f32 %v379, %v1077
        %v1079 = vpop.f32.mrb[0].mxu0
        %v1080 = vadd.f32 %v383, %v1079
        %v1081 = vpop.f32.mrb[0].mxu0
        %v1082 = vadd.f32 %v379, %v1081
        %v1083 = vpop.f32.mrb[0].mxu0
        %v1084 = vadd.f32 %v383, %v1083
        %1085 = vmatprep.mubr.bf16.mxu0 0
        %1086 = vmatmul.mubr.bf16.gmra.mrb[0].mxu0 %v875
        %v1087 = vpop.f32.mrb[0].mxu0
        %v1088 = vadd.f32 %v379, %v1087
        %v1089 = vpop.f32.mrb[0].mxu0
        %v1090 = vadd.f32 %v383, %v1089
        %v1091 = vpop.f32.mrb[0].mxu0
        %v1092 = vadd.f32 %v379, %v1091
        %v1093 = vpop.f32.mrb[0].mxu0
        %v1094 = vadd.f32 %v383, %v1093
        %1095 = vmatprep.mubr.bf16.mxu0 0
        %1096 = vmatmul.mubr.bf16.gmra.mrb[0].mxu0 %v878
        %v1097 = vpop.f32.mrb[0].mxu0
        %v1098 = vadd.f32 %v379, %v1097
        %v1099 = vpop.f32.mrb[0].mxu0
        %v1100 = vadd.f32 %v383, %v1099
        %v1101 = vpop.f32.mrb[0].mxu0
        %v1102 = vadd.f32 %v379, %v1101
        %v1103 = vpop.f32.mrb[0].mxu0
        %v1104 = vadd.f32 %v383, %v1103
        %1105 = vdwg.mxu0
        %v1106 = vmax.f32 %v915, 0.0
        %v1107 = vmax.f32 %v917, 0.0
        %v1108 = vmax.f32 %v1028, 0.0
        %v1109 = vmax.f32 %v1030, 0.0
        %v1110 = vmax.f32 %v919, 0.0
        %v1111 = vmax.f32 %v921, 0.0
        %v1112 = vmax.f32 %v1032, 0.0
        %v1113 = vmax.f32 %v1034, 0.0
        %v1114 = vmax.f32 %v925, 0.0
        %v1115 = vmax.f32 %v927, 0.0
        %v1116 = vmax.f32 %v1038, 0.0
        %v1117 = vmax.f32 %v1040, 0.0
        %v1118 = vmax.f32 %v929, 0.0
        %v1119 = vmax.f32 %v931, 0.0
        %v1120 = vmax.f32 %v1042, 0.0
        %v1121 = vmax.f32 %v1044, 0.0
        %v1122 = vmax.f32 %v935, 0.0
        %v1123 = vmax.f32 %v937, 0.0
        %v1124 = vmax.f32 %v1048, 0.0
        %v1125 = vmax.f32 %v1050, 0.0
        %v1126 = vmax.f32 %v939, 0.0
        %v1127 = vmax.f32 %v941, 0.0
        %v1128 = vmax.f32 %v1052, 0.0
        %v1129 = vmax.f32 %v1054, 0.0
        %v1130 = vmax.f32 %v945, 0.0
        %v1131 = vmax.f32 %v947, 0.0
        %v1132 = vmax.f32 %v1058, 0.0
        %v1133 = vmax.f32 %v1060, 0.0
        %v1134 = vmax.f32 %v949, 0.0
        %v1135 = vmax.f32 %v951, 0.0
        %v1136 = vmax.f32 %v1062, 0.0
        %v1137 = vmax.f32 %v1064, 0.0
        %v1138 = vmax.f32 %v955, 0.0
        %v1139 = vmax.f32 %v957, 0.0
        %v1140 = vmax.f32 %v1068, 0.0
        %v1141 = vmax.f32 %v1070, 0.0
        %v1142 = vmax.f32 %v959, 0.0
        %v1143 = vmax.f32 %v961, 0.0
        %v1144 = vmax.f32 %v1072, 0.0
        %v1145 = vmax.f32 %v1074, 0.0
        %v1146 = vmax.f32 %v965, 0.0
        %v1147 = vmax.f32 %v967, 0.0
        %v1148 = vmax.f32 %v1078, 0.0
        %v1149 = vmax.f32 %v1080, 0.0
        %v1150 = vmax.f32 %v969, 0.0
        %v1151 = vmax.f32 %v971, 0.0
        %v1152 = vmax.f32 %v1082, 0.0
        %v1153 = vmax.f32 %v1084, 0.0
        %v1154 = vmax.f32 %v975, 0.0
        %v1155 = vmax.f32 %v977, 0.0
        %v1156 = vmax.f32 %v1088, 0.0
        %v1157 = vmax.f32 %v1090, 0.0
        %v1158 = vmax.f32 %v979, 0.0
        %v1159 = vmax.f32 %v981, 0.0
        %v1160 = vmax.f32 %v1092, 0.0
        %v1161 = vmax.f32 %v1094, 0.0
        %v1162 = vmax.f32 %v985, 0.0
        %v1163 = vmax.f32 %v987, 0.0
        %v1164 = vmax.f32 %v1098, 0.0
        %v1165 = vmax.f32 %v1100, 0.0
        %v1166 = vmax.f32 %v989, 0.0
        %v1167 = vmax.f32 %v991, 0.0
        %v1168 = vmax.f32 %v1102, 0.0
        %v1169 = vmax.f32 %v1104, 0.0
        %v1170 = vadd.f32 %v1106, %v1110
        %v1171 = vadd.f32 %v1170, %v1114
        %v1172 = vadd.f32 %v1171, %v1118
        %v1173 = vadd.f32 %v1172, %v1122
        %v1174 = vadd.f32 %v1173, %v1126
        %v1175 = vadd.f32 %v1174, %v1130
        %v1176 = vadd.f32 %v1175, %v1134
        %v1177 = vadd.f32 %v1176, %v1138
        %v1178 = vadd.f32 %v1177, %v1142
        %v1179 = vadd.f32 %v1178, %v1146
        %v1180 = vadd.f32 %v1179, %v1150
        %v1181 = vadd.f32 %v1180, %v1154
        %v1182 = vadd.f32 %v1181, %v1158
        %v1183 = vadd.f32 %v1182, %v1162
        %v1184 = vadd.f32 %v1183, %v1166
        %v1185 = vrot.slane %v1184, 4
        %v1186 = vadd.f32 %v1184, %v1185
        %v1187 = vrot.slane %v1186, 2
        %v1188 = vadd.f32 %v1186, %v1187
        %v1189 = vrot.slane %v1188, 1
        %v1190 = vadd.f32 %v1188, %v1189
        %v1191 = vadd.f32 %v1107, %v1111
        %v1192 = vadd.f32 %v1191, %v1115
        %v1193 = vadd.f32 %v1192, %v1119
        %v1194 = vadd.f32 %v1193, %v1123
        %v1195 = vadd.f32 %v1194, %v1127
        %v1196 = vadd.f32 %v1195, %v1131
        %v1197 = vadd.f32 %v1196, %v1135
        %v1198 = vadd.f32 %v1197, %v1139
        %v1199 = vadd.f32 %v1198, %v1143
        %v1200 = vadd.f32 %v1199, %v1147
        %v1201 = vadd.f32 %v1200, %v1151
        %v1202 = vadd.f32 %v1201, %v1155
        %v1203 = vadd.f32 %v1202, %v1159
        %v1204 = vadd.f32 %v1203, %v1163
        %v1205 = vadd.f32 %v1204, %v1167
        %v1206 = vrot.slane %v1205, 4
        %v1207 = vadd.f32 %v1205, %v1206
        %v1208 = vrot.slane %v1207, 2
        %v1209 = vadd.f32 %v1207, %v1208
        %v1210 = vrot.slane %v1209, 1
        %v1211 = vadd.f32 %v1209, %v1210
        %v1212 = vadd.f32 %v1108, %v1112
        %v1213 = vadd.f32 %v1212, %v1116
        %v1214 = vadd.f32 %v1213, %v1120
        %v1215 = vadd.f32 %v1214, %v1124
        %v1216 = vadd.f32 %v1215, %v1128
        %v1217 = vadd.f32 %v1216, %v1132
        %v1218 = vadd.f32 %v1217, %v1136
        %v1219 = vadd.f32 %v1218, %v1140
        %v1220 = vadd.f32 %v1219, %v1144
        %v1221 = vadd.f32 %v1220, %v1148
        %v1222 = vadd.f32 %v1221, %v1152
        %v1223 = vadd.f32 %v1222, %v1156
        %v1224 = vadd.f32 %v1223, %v1160
        %v1225 = vadd.f32 %v1224, %v1164
        %v1226 = vadd.f32 %v1225, %v1168
        %v1227 = vrot.slane %v1226, 4
        %v1228 = vadd.f32 %v1226, %v1227
        %v1229 = vrot.slane %v1228, 2
        %v1230 = vadd.f32 %v1228, %v1229
        %v1231 = vrot.slane %v1230, 1
        %v1232 = vadd.f32 %v1230, %v1231
        %v1233 = vadd.f32 %v1109, %v1113
        %v1234 = vadd.f32 %v1233, %v1117
        %v1235 = vadd.f32 %v1234, %v1121
        %v1236 = vadd.f32 %v1235, %v1125
        %v1237 = vadd.f32 %v1236, %v1129
        %v1238 = vadd.f32 %v1237, %v1133
        %v1239 = vadd.f32 %v1238, %v1137
        %v1240 = vadd.f32 %v1239, %v1141
        %v1241 = vadd.f32 %v1240, %v1145
        %v1242 = vadd.f32 %v1241, %v1149
        %v1243 = vadd.f32 %v1242, %v1153
        %v1244 = vadd.f32 %v1243, %v1157
        %v1245 = vadd.f32 %v1244, %v1161
        %v1246 = vadd.f32 %v1245, %v1165
        %v1247 = vadd.f32 %v1246, %v1169
        %v1248 = vrot.slane %v1247, 4
        %v1249 = vadd.f32 %v1247, %v1248
        %v1250 = vrot.slane %v1249, 2
        %v1251 = vadd.f32 %v1249, %v1250
        %v1252 = vrot.slane %v1251, 1
        %v1253 = vadd.f32 %v1251, %v1252
        %v1254 = vadd.f32 %v834, %v1190
        %v1255 = vadd.f32 %v835, %v1211
        %v1256 = vadd.f32 %v836, %v1232
        %v1257 = vadd.f32 %v837, %v1253
        %v1258 = vld [vmem:[#allocation2] sm:$0xf]
        %v1263 = vcombine.low %v1254, %v1255
        %v1264 = vcombine.low %v1256, %v1257
        %v1266 = vunpack.c.l.s4 1966171168
        %v1267 = vunpack.c.0.s8 %v1266
        %v1268 = vlaneseq
        %v1269 = vshrl.u32 %v1268, 7
        %v1270 = vsub.s32 %v1267, %v1269
        %v1271 = vrot.slane %v1263, %v1270
        %v1273 = vunpack.c.l.s4 1966171168
        %v1274 = vunpack.c.0.s8 %v1273
        %v1275 = vlaneseq
        %v1276 = vshrl.u32 %v1275, 7
        %v1277 = vsub.s32 %v1274, %v1276
        %v1278 = vrot.slane %v1264, %v1277
        %v1279 = vcombine.low %v1271, %v1278
        %v1281 = vunpack.c.l.s4 1966171168
        %v1282 = vunpack.c.0.s8 %v1281
        %v1283 = vlaneseq
        %v1284 = vshrl.u32 %v1283, 7
        %v1285 = vsub.s32 %v1282, %v1284
        %v1286 = vrot.slane %v1279, %v1285
        %v1288 = vadd.f32 %v1258, %v1286
        %v1289 = vlaneseq
        %vm1290 = vcmp.ge.s32.totalorder %v1289, 0
        %vm1291 = vcmp.lt.s32.totalorder %v1289, 512
        %vm1292 = vmand %vm1290, %vm1291
        %1293 = vst.msk [vmem:[#allocation2] sm:$0xf] %vm1292, %v1288
        // Predicated region
        $region69: #{tpu_custom_call.1} parent=47 // pred_check
          %p1294 = pneg %p354
        $region70: #{tpu_custom_call.1} parent=47 // pred_check_branch
          %1296 = sbr.rel (%p1294) target = $region72
        $region71: #{tpu_custom_call.1} parent=47 // pred_region
          %v1297 = vld [vmem:[#allocation2] sm:$0xf]
          %v1299 = vlaneseq
          %v1300 = vshrl.u32 %v1299, 7
          %v1301 = vsub.s32 0, %v1300
          %v1302 = vrot.slane %v1297, %v1301
          %v1303 = vlaneseq
          %v1304 = vshrl.u32 %v1303, 7
          %v1305 = vsub.s32 1, %v1304
          %v1306 = vrot.slane %v1297, %v1305
          %v1307 = vlaneseq
          %v1308 = vshrl.u32 %v1307, 7
          %v1309 = vsub.s32 2, %v1308
          %v1310 = vrot.slane %v1297, %v1309
          %v1311 = vlaneseq
          %v1312 = vshrl.u32 %v1311, 7
          %v1313 = vsub.s32 3, %v1312
          %v1314 = vrot.slane %v1297, %v1313
          %v1319 = vpack.c.bf16 %v1302, %v1302
          %v1320 = vpack.c.bf16 %v1306, %v1306
          %v1321 = vpack.c.bf16 %v1310, %v1310
          %v1322 = vpack.c.bf16 %v1314, %v1314
          %v1323 = vld [vmem:[#allocation8] sm:$0xff]
          %v1324 = vld [vmem:[#allocation8 + $0x8] sm:$0xff]
          %v1325 = vld [vmem:[#allocation8 + $0x10] sm:$0xff]
          %v1326 = vld [vmem:[#allocation8 + $0x18] sm:$0xff]
          %v1327 = vld [vmem:[#allocation8 + $0x20] sm:$0xff]
          %v1328 = vld [vmem:[#allocation8 + $0x28] sm:$0xff]
          %v1329 = vld [vmem:[#allocation8 + $0x30] sm:$0xff]
          %v1330 = vld [vmem:[#allocation8 + $0x38] sm:$0xff]
          %v1331 = vld [vmem:[#allocation8 + $0x40] sm:$0xff]
          %v1332 = vld [vmem:[#allocation8 + $0x48] sm:$0xff]
          %v1333 = vld [vmem:[#allocation8 + $0x50] sm:$0xff]
          %v1334 = vld [vmem:[#allocation8 + $0x58] sm:$0xff]
          %v1335 = vld [vmem:[#allocation8 + $0x60] sm:$0xff]
          %v1336 = vld [vmem:[#allocation8 + $0x68] sm:$0xff]
          %v1337 = vld [vmem:[#allocation8 + $0x70] sm:$0xff]
          %v1338 = vld [vmem:[#allocation8 + $0x78] sm:$0xff]
          %v1339 = vld [vmem:[#allocation8 + $0x80] sm:$0xff]
          %v1340 = vld [vmem:[#allocation8 + $0x88] sm:$0xff]
          %v1341 = vld [vmem:[#allocation8 + $0x90] sm:$0xff]
          %v1342 = vld [vmem:[#allocation8 + $0x98] sm:$0xff]
          %v1343 = vld [vmem:[#allocation8 + $0xa0] sm:$0xff]
          %v1344 = vld [vmem:[#allocation8 + $0xa8] sm:$0xff]
          %v1345 = vld [vmem:[#allocation8 + $0xb0] sm:$0xff]
          %v1346 = vld [vmem:[#allocation8 + $0xb8] sm:$0xff]
          %v1347 = vld [vmem:[#allocation8 + $0xc0] sm:$0xff]
          %v1348 = vld [vmem:[#allocation8 + $0xc8] sm:$0xff]
          %v1349 = vld [vmem:[#allocation8 + $0xd0] sm:$0xff]
          %v1350 = vld [vmem:[#allocation8 + $0xd8] sm:$0xff]
          %v1351 = vld [vmem:[#allocation8 + $0xe0] sm:$0xff]
          %v1352 = vld [vmem:[#allocation8 + $0xe8] sm:$0xff]
          %v1353 = vld [vmem:[#allocation8 + $0xf0] sm:$0xff]
          %v1354 = vld [vmem:[#allocation8 + $0xf8] sm:$0xff]
          %v1355 = vld [vmem:[#allocation8 + $0x100] sm:$0xff]
          %v1356 = vld [vmem:[#allocation8 + $0x108] sm:$0xff]
          %v1357 = vld [vmem:[#allocation8 + $0x110] sm:$0xff]
          %v1358 = vld [vmem:[#allocation8 + $0x118] sm:$0xff]
          %v1359 = vld [vmem:[#allocation8 + $0x120] sm:$0xff]
          %v1360 = vld [vmem:[#allocation8 + $0x128] sm:$0xff]
          %v1361 = vld [vmem:[#allocation8 + $0x130] sm:$0xff]
          %v1362 = vld [vmem:[#allocation8 + $0x138] sm:$0xff]
          %v1363 = vld [vmem:[#allocation8 + $0x140] sm:$0xff]
          %v1364 = vld [vmem:[#allocation8 + $0x148] sm:$0xff]
          %v1365 = vld [vmem:[#allocation8 + $0x150] sm:$0xff]
          %v1366 = vld [vmem:[#allocation8 + $0x158] sm:$0xff]
          %v1367 = vld [vmem:[#allocation8 + $0x160] sm:$0xff]
          %v1368 = vld [vmem:[#allocation8 + $0x168] sm:$0xff]
          %v1369 = vld [vmem:[#allocation8 + $0x170] sm:$0xff]
          %v1370 = vld [vmem:[#allocation8 + $0x178] sm:$0xff]
          %v1371 = vld [vmem:[#allocation8 + $0x180] sm:$0xff]
          %v1372 = vld [vmem:[#allocation8 + $0x188] sm:$0xff]
          %v1373 = vld [vmem:[#allocation8 + $0x190] sm:$0xff]
          %v1374 = vld [vmem:[#allocation8 + $0x198] sm:$0xff]
          %v1375 = vld [vmem:[#allocation8 + $0x1a0] sm:$0xff]
          %v1376 = vld [vmem:[#allocation8 + $0x1a8] sm:$0xff]
          %v1377 = vld [vmem:[#allocation8 + $0x1b0] sm:$0xff]
          %v1378 = vld [vmem:[#allocation8 + $0x1b8] sm:$0xff]
          %v1379 = vld [vmem:[#allocation8 + $0x1c0] sm:$0xff]
          %v1380 = vld [vmem:[#allocation8 + $0x1c8] sm:$0xff]
          %v1381 = vld [vmem:[#allocation8 + $0x1d0] sm:$0xff]
          %v1382 = vld [vmem:[#allocation8 + $0x1d8] sm:$0xff]
          %v1383 = vld [vmem:[#allocation8 + $0x1e0] sm:$0xff]
          %v1384 = vld [vmem:[#allocation8 + $0x1e8] sm:$0xff]
          %v1385 = vld [vmem:[#allocation8 + $0x1f0] sm:$0xff]
          %v1386 = vld [vmem:[#allocation8 + $0x1f8] sm:$0xff]
          %v1387 = vld [vmem:[#allocation8 + $0x200] sm:$0xff]
          %v1388 = vld [vmem:[#allocation8 + $0x208] sm:$0xff]
          %v1389 = vld [vmem:[#allocation8 + $0x210] sm:$0xff]
          %v1390 = vld [vmem:[#allocation8 + $0x218] sm:$0xff]
          %v1391 = vld [vmem:[#allocation8 + $0x220] sm:$0xff]
          %v1392 = vld [vmem:[#allocation8 + $0x228] sm:$0xff]
          %v1393 = vld [vmem:[#allocation8 + $0x230] sm:$0xff]
          %v1394 = vld [vmem:[#allocation8 + $0x238] sm:$0xff]
          %v1395 = vld [vmem:[#allocation8 + $0x240] sm:$0xff]
          %v1396 = vld [vmem:[#allocation8 + $0x248] sm:$0xff]
          %v1397 = vld [vmem:[#allocation8 + $0x250] sm:$0xff]
          %v1398 = vld [vmem:[#allocation8 + $0x258] sm:$0xff]
          %v1399 = vld [vmem:[#allocation8 + $0x260] sm:$0xff]
          %v1400 = vld [vmem:[#allocation8 + $0x268] sm:$0xff]
          %v1401 = vld [vmem:[#allocation8 + $0x270] sm:$0xff]
          %v1402 = vld [vmem:[#allocation8 + $0x278] sm:$0xff]
          %v1403 = vld [vmem:[#allocation8 + $0x280] sm:$0xff]
          %v1404 = vld [vmem:[#allocation8 + $0x288] sm:$0xff]
          %v1405 = vld [vmem:[#allocation8 + $0x290] sm:$0xff]
          %v1406 = vld [vmem:[#allocation8 + $0x298] sm:$0xff]
          %v1407 = vld [vmem:[#allocation8 + $0x2a0] sm:$0xff]
          %v1408 = vld [vmem:[#allocation8 + $0x2a8] sm:$0xff]
          %v1409 = vld [vmem:[#allocation8 + $0x2b0] sm:$0xff]
          %v1410 = vld [vmem:[#allocation8 + $0x2b8] sm:$0xff]
          %v1411 = vld [vmem:[#allocation8 + $0x2c0] sm:$0xff]
          %v1412 = vld [vmem:[#allocation8 + $0x2c8] sm:$0xff]
          %v1413 = vld [vmem:[#allocation8 + $0x2d0] sm:$0xff]
          %v1414 = vld [vmem:[#allocation8 + $0x2d8] sm:$0xff]
          %v1415 = vld [vmem:[#allocation8 + $0x2e0] sm:$0xff]
          %v1416 = vld [vmem:[#allocation8 + $0x2e8] sm:$0xff]
          %v1417 = vld [vmem:[#allocation8 + $0x2f0] sm:$0xff]
          %v1418 = vld [vmem:[#allocation8 + $0x2f8] sm:$0xff]
          %v1419 = vld [vmem:[#allocation8 + $0x300] sm:$0xff]
          %v1420 = vld [vmem:[#allocation8 + $0x308] sm:$0xff]
          %v1421 = vld [vmem:[#allocation8 + $0x310] sm:$0xff]
          %v1422 = vld [vmem:[#allocation8 + $0x318] sm:$0xff]
          %v1423 = vld [vmem:[#allocation8 + $0x320] sm:$0xff]
          %v1424 = vld [vmem:[#allocation8 + $0x328] sm:$0xff]
          %v1425 = vld [vmem:[#allocation8 + $0x330] sm:$0xff]
          %v1426 = vld [vmem:[#allocation8 + $0x338] sm:$0xff]
          %v1427 = vld [vmem:[#allocation8 + $0x340] sm:$0xff]
          %v1428 = vld [vmem:[#allocation8 + $0x348] sm:$0xff]
          %v1429 = vld [vmem:[#allocation8 + $0x350] sm:$0xff]
          %v1430 = vld [vmem:[#allocation8 + $0x358] sm:$0xff]
          %v1431 = vld [vmem:[#allocation8 + $0x360] sm:$0xff]
          %v1432 = vld [vmem:[#allocation8 + $0x368] sm:$0xff]
          %v1433 = vld [vmem:[#allocation8 + $0x370] sm:$0xff]
          %v1434 = vld [vmem:[#allocation8 + $0x378] sm:$0xff]
          %v1435 = vld [vmem:[#allocation8 + $0x380] sm:$0xff]
          %v1436 = vld [vmem:[#allocation8 + $0x388] sm:$0xff]
          %v1437 = vld [vmem:[#allocation8 + $0x390] sm:$0xff]
          %v1438 = vld [vmem:[#allocation8 + $0x398] sm:$0xff]
          %v1439 = vld [vmem:[#allocation8 + $0x3a0] sm:$0xff]
          %v1440 = vld [vmem:[#allocation8 + $0x3a8] sm:$0xff]
          %v1441 = vld [vmem:[#allocation8 + $0x3b0] sm:$0xff]
          %v1442 = vld [vmem:[#allocation8 + $0x3b8] sm:$0xff]
          %v1443 = vld [vmem:[#allocation8 + $0x3c0] sm:$0xff]
          %v1444 = vld [vmem:[#allocation8 + $0x3c8] sm:$0xff]
          %v1445 = vld [vmem:[#allocation8 + $0x3d0] sm:$0xff]
          %v1446 = vld [vmem:[#allocation8 + $0x3d8] sm:$0xff]
          %v1447 = vld [vmem:[#allocation8 + $0x3e0] sm:$0xff]
          %v1448 = vld [vmem:[#allocation8 + $0x3e8] sm:$0xff]
          %v1449 = vld [vmem:[#allocation8 + $0x3f0] sm:$0xff]
          %v1450 = vld [vmem:[#allocation8 + $0x3f8] sm:$0xff]
          %v1451 = vld [vmem:[%s4] sm:$0xf]
          %v1580 = vunpack.c.l.b16 %v1323
          %v1581 = vunpack.c.h.b16 %v1323
          %v1582 = vunpack.c.l.b16 %v1324
          %v1583 = vunpack.c.h.b16 %v1324
          %v1584 = vunpack.c.l.b16 %v1325
          %v1585 = vunpack.c.h.b16 %v1325
          %v1586 = vunpack.c.l.b16 %v1326
          %v1587 = vunpack.c.h.b16 %v1326
          %v1588 = vunpack.c.l.b16 %v1327
          %v1589 = vunpack.c.h.b16 %v1327
          %v1590 = vunpack.c.l.b16 %v1328
          %v1591 = vunpack.c.h.b16 %v1328
          %v1592 = vunpack.c.l.b16 %v1329
          %v1593 = vunpack.c.h.b16 %v1329
          %v1594 = vunpack.c.l.b16 %v1330
          %v1595 = vunpack.c.h.b16 %v1330
          %v1596 = vunpack.c.l.b16 %v1331
          %v1597 = vunpack.c.h.b16 %v1331
          %v1598 = vunpack.c.l.b16 %v1332
          %v1599 = vunpack.c.h.b16 %v1332
          %v1600 = vunpack.c.l.b16 %v1333
          %v1601 = vunpack.c.h.b16 %v1333
          %v1602 = vunpack.c.l.b16 %v1334
          %v1603 = vunpack.c.h.b16 %v1334
          %v1604 = vunpack.c.l.b16 %v1335
          %v1605 = vunpack.c.h.b16 %v1335
          %v1606 = vunpack.c.l.b16 %v1336
          %v1607 = vunpack.c.h.b16 %v1336
          %v1608 = vunpack.c.l.b16 %v1337
          %v1609 = vunpack.c.h.b16 %v1337
          %v1610 = vunpack.c.l.b16 %v1338
          %v1611 = vunpack.c.h.b16 %v1338
          %v1612 = vunpack.c.l.b16 %v1339
          %v1613 = vunpack.c.h.b16 %v1339
          %v1614 = vunpack.c.l.b16 %v1340
          %v1615 = vunpack.c.h.b16 %v1340
          %v1616 = vunpack.c.l.b16 %v1341
          %v1617 = vunpack.c.h.b16 %v1341
          %v1618 = vunpack.c.l.b16 %v1342
          %v1619 = vunpack.c.h.b16 %v1342
          %v1620 = vunpack.c.l.b16 %v1343
          %v1621 = vunpack.c.h.b16 %v1343
          %v1622 = vunpack.c.l.b16 %v1344
          %v1623 = vunpack.c.h.b16 %v1344
          %v1624 = vunpack.c.l.b16 %v1345
          %v1625 = vunpack.c.h.b16 %v1345
          %v1626 = vunpack.c.l.b16 %v1346
          %v1627 = vunpack.c.h.b16 %v1346
          %v1628 = vunpack.c.l.b16 %v1347
          %v1629 = vunpack.c.h.b16 %v1347
          %v1630 = vunpack.c.l.b16 %v1348
          %v1631 = vunpack.c.h.b16 %v1348
          %v1632 = vunpack.c.l.b16 %v1349
          %v1633 = vunpack.c.h.b16 %v1349
          %v1634 = vunpack.c.l.b16 %v1350
          %v1635 = vunpack.c.h.b16 %v1350
          %v1636 = vunpack.c.l.b16 %v1351
          %v1637 = vunpack.c.h.b16 %v1351
          %v1638 = vunpack.c.l.b16 %v1352
          %v1639 = vunpack.c.h.b16 %v1352
          %v1640 = vunpack.c.l.b16 %v1353
          %v1641 = vunpack.c.h.b16 %v1353
          %v1642 = vunpack.c.l.b16 %v1354
          %v1643 = vunpack.c.h.b16 %v1354
          %v1644 = vunpack.c.l.b16 %v1355
          %v1645 = vunpack.c.h.b16 %v1355
          %v1646 = vunpack.c.l.b16 %v1356
          %v1647 = vunpack.c.h.b16 %v1356
          %v1648 = vunpack.c.l.b16 %v1357
          %v1649 = vunpack.c.h.b16 %v1357
          %v1650 = vunpack.c.l.b16 %v1358
          %v1651 = vunpack.c.h.b16 %v1358
          %v1652 = vunpack.c.l.b16 %v1359
          %v1653 = vunpack.c.h.b16 %v1359
          %v1654 = vunpack.c.l.b16 %v1360
          %v1655 = vunpack.c.h.b16 %v1360
          %v1656 = vunpack.c.l.b16 %v1361
          %v1657 = vunpack.c.h.b16 %v1361
          %v1658 = vunpack.c.l.b16 %v1362
          %v1659 = vunpack.c.h.b16 %v1362
          %v1660 = vunpack.c.l.b16 %v1363
          %v1661 = vunpack.c.h.b16 %v1363
          %v1662 = vunpack.c.l.b16 %v1364
          %v1663 = vunpack.c.h.b16 %v1364
          %v1664 = vunpack.c.l.b16 %v1365
          %v1665 = vunpack.c.h.b16 %v1365
          %v1666 = vunpack.c.l.b16 %v1366
          %v1667 = vunpack.c.h.b16 %v1366
          %v1668 = vunpack.c.l.b16 %v1367
          %v1669 = vunpack.c.h.b16 %v1367
          %v1670 = vunpack.c.l.b16 %v1368
          %v1671 = vunpack.c.h.b16 %v1368
          %v1672 = vunpack.c.l.b16 %v1369
          %v1673 = vunpack.c.h.b16 %v1369
          %v1674 = vunpack.c.l.b16 %v1370
          %v1675 = vunpack.c.h.b16 %v1370
          %v1676 = vunpack.c.l.b16 %v1371
          %v1677 = vunpack.c.h.b16 %v1371
          %v1678 = vunpack.c.l.b16 %v1372
          %v1679 = vunpack.c.h.b16 %v1372
          %v1680 = vunpack.c.l.b16 %v1373
          %v1681 = vunpack.c.h.b16 %v1373
          %v1682 = vunpack.c.l.b16 %v1374
          %v1683 = vunpack.c.h.b16 %v1374
          %v1684 = vunpack.c.l.b16 %v1375
          %v1685 = vunpack.c.h.b16 %v1375
          %v1686 = vunpack.c.l.b16 %v1376
          %v1687 = vunpack.c.h.b16 %v1376
          %v1688 = vunpack.c.l.b16 %v1377
          %v1689 = vunpack.c.h.b16 %v1377
          %v1690 = vunpack.c.l.b16 %v1378
          %v1691 = vunpack.c.h.b16 %v1378
          %v1692 = vunpack.c.l.b16 %v1379
          %v1693 = vunpack.c.h.b16 %v1379
          %v1694 = vunpack.c.l.b16 %v1380
          %v1695 = vunpack.c.h.b16 %v1380
          %v1696 = vunpack.c.l.b16 %v1381
          %v1697 = vunpack.c.h.b16 %v1381
          %v1698 = vunpack.c.l.b16 %v1382
          %v1699 = vunpack.c.h.b16 %v1382
          %v1700 = vunpack.c.l.b16 %v1383
          %v1701 = vunpack.c.h.b16 %v1383
          %v1702 = vunpack.c.l.b16 %v1384
          %v1703 = vunpack.c.h.b16 %v1384
          %v1704 = vunpack.c.l.b16 %v1385
          %v1705 = vunpack.c.h.b16 %v1385
          %v1706 = vunpack.c.l.b16 %v1386
          %v1707 = vunpack.c.h.b16 %v1386
          %v1708 = vunpack.c.l.b16 %v1387
          %v1709 = vunpack.c.h.b16 %v1387
          %v1710 = vunpack.c.l.b16 %v1388
          %v1711 = vunpack.c.h.b16 %v1388
          %v1712 = vunpack.c.l.b16 %v1389
          %v1713 = vunpack.c.h.b16 %v1389
          %v1714 = vunpack.c.l.b16 %v1390
          %v1715 = vunpack.c.h.b16 %v1390
          %v1716 = vunpack.c.l.b16 %v1391
          %v1717 = vunpack.c.h.b16 %v1391
          %v1718 = vunpack.c.l.b16 %v1392
          %v1719 = vunpack.c.h.b16 %v1392
          %v1720 = vunpack.c.l.b16 %v1393
          %v1721 = vunpack.c.h.b16 %v1393
          %v1722 = vunpack.c.l.b16 %v1394
          %v1723 = vunpack.c.h.b16 %v1394
          %v1724 = vunpack.c.l.b16 %v1395
          %v1725 = vunpack.c.h.b16 %v1395
          %v1726 = vunpack.c.l.b16 %v1396
          %v1727 = vunpack.c.h.b16 %v1396
          %v1728 = vunpack.c.l.b16 %v1397
          %v1729 = vunpack.c.h.b16 %v1397
          %v1730 = vunpack.c.l.b16 %v1398
          %v1731 = vunpack.c.h.b16 %v1398
          %v1732 = vunpack.c.l.b16 %v1399
          %v1733 = vunpack.c.h.b16 %v1399
          %v1734 = vunpack.c.l.b16 %v1400
          %v1735 = vunpack.c.h.b16 %v1400
          %v1736 = vunpack.c.l.b16 %v1401
          %v1737 = vunpack.c.h.b16 %v1401
          %v1738 = vunpack.c.l.b16 %v1402
          %v1739 = vunpack.c.h.b16 %v1402
          %v1740 = vunpack.c.l.b16 %v1403
          %v1741 = vunpack.c.h.b16 %v1403
          %v1742 = vunpack.c.l.b16 %v1404
          %v1743 = vunpack.c.h.b16 %v1404
          %v1744 = vunpack.c.l.b16 %v1405
          %v1745 = vunpack.c.h.b16 %v1405
          %v1746 = vunpack.c.l.b16 %v1406
          %v1747 = vunpack.c.h.b16 %v1406
          %v1748 = vunpack.c.l.b16 %v1407
          %v1749 = vunpack.c.h.b16 %v1407
          %v1750 = vunpack.c.l.b16 %v1408
          %v1751 = vunpack.c.h.b16 %v1408
          %v1752 = vunpack.c.l.b16 %v1409
          %v1753 = vunpack.c.h.b16 %v1409
          %v1754 = vunpack.c.l.b16 %v1410
          %v1755 = vunpack.c.h.b16 %v1410
          %v1756 = vunpack.c.l.b16 %v1411
          %v1757 = vunpack.c.h.b16 %v1411
          %v1758 = vunpack.c.l.b16 %v1412
          %v1759 = vunpack.c.h.b16 %v1412
          %v1760 = vunpack.c.l.b16 %v1413
          %v1761 = vunpack.c.h.b16 %v1413
          %v1762 = vunpack.c.l.b16 %v1414
          %v1763 = vunpack.c.h.b16 %v1414
          %v1764 = vunpack.c.l.b16 %v1415
          %v1765 = vunpack.c.h.b16 %v1415
          %v1766 = vunpack.c.l.b16 %v1416
          %v1767 = vunpack.c.h.b16 %v1416
          %v1768 = vunpack.c.l.b16 %v1417
          %v1769 = vunpack.c.h.b16 %v1417
          %v1770 = vunpack.c.l.b16 %v1418
          %v1771 = vunpack.c.h.b16 %v1418
          %v1772 = vunpack.c.l.b16 %v1419
          %v1773 = vunpack.c.h.b16 %v1419
          %v1774 = vunpack.c.l.b16 %v1420
          %v1775 = vunpack.c.h.b16 %v1420
          %v1776 = vunpack.c.l.b16 %v1421
          %v1777 = vunpack.c.h.b16 %v1421
          %v1778 = vunpack.c.l.b16 %v1422
          %v1779 = vunpack.c.h.b16 %v1422
          %v1780 = vunpack.c.l.b16 %v1423
          %v1781 = vunpack.c.h.b16 %v1423
          %v1782 = vunpack.c.l.b16 %v1424
          %v1783 = vunpack.c.h.b16 %v1424
          %v1784 = vunpack.c.l.b16 %v1425
          %v1785 = vunpack.c.h.b16 %v1425
          %v1786 = vunpack.c.l.b16 %v1426
          %v1787 = vunpack.c.h.b16 %v1426
          %v1788 = vunpack.c.l.b16 %v1427
          %v1789 = vunpack.c.h.b16 %v1427
          %v1790 = vunpack.c.l.b16 %v1428
          %v1791 = vunpack.c.h.b16 %v1428
          %v1792 = vunpack.c.l.b16 %v1429
          %v1793 = vunpack.c.h.b16 %v1429
          %v1794 = vunpack.c.l.b16 %v1430
          %v1795 = vunpack.c.h.b16 %v1430
          %v1796 = vunpack.c.l.b16 %v1431
          %v1797 = vunpack.c.h.b16 %v1431
          %v1798 = vunpack.c.l.b16 %v1432
          %v1799 = vunpack.c.h.b16 %v1432
          %v1800 = vunpack.c.l.b16 %v1433
          %v1801 = vunpack.c.h.b16 %v1433
          %v1802 = vunpack.c.l.b16 %v1434
          %v1803 = vunpack.c.h.b16 %v1434
          %v1804 = vunpack.c.l.b16 %v1435
          %v1805 = vunpack.c.h.b16 %v1435
          %v1806 = vunpack.c.l.b16 %v1436
          %v1807 = vunpack.c.h.b16 %v1436
          %v1808 = vunpack.c.l.b16 %v1437
          %v1809 = vunpack.c.h.b16 %v1437
          %v1810 = vunpack.c.l.b16 %v1438
          %v1811 = vunpack.c.h.b16 %v1438
          %v1812 = vunpack.c.l.b16 %v1439
          %v1813 = vunpack.c.h.b16 %v1439
          %v1814 = vunpack.c.l.b16 %v1440
          %v1815 = vunpack.c.h.b16 %v1440
          %v1816 = vunpack.c.l.b16 %v1441
          %v1817 = vunpack.c.h.b16 %v1441
          %v1818 = vunpack.c.l.b16 %v1442
          %v1819 = vunpack.c.h.b16 %v1442
          %v1820 = vunpack.c.l.b16 %v1443
          %v1821 = vunpack.c.h.b16 %v1443
          %v1822 = vunpack.c.l.b16 %v1444
          %v1823 = vunpack.c.h.b16 %v1444
          %v1824 = vunpack.c.l.b16 %v1445
          %v1825 = vunpack.c.h.b16 %v1445
          %v1826 = vunpack.c.l.b16 %v1446
          %v1827 = vunpack.c.h.b16 %v1446
          %v1828 = vunpack.c.l.b16 %v1447
          %v1829 = vunpack.c.h.b16 %v1447
          %v1830 = vunpack.c.l.b16 %v1448
          %v1831 = vunpack.c.h.b16 %v1448
          %v1832 = vunpack.c.l.b16 %v1449
          %v1833 = vunpack.c.h.b16 %v1449
          %v1834 = vunpack.c.l.b16 %v1450
          %v1835 = vunpack.c.h.b16 %v1450
          %v1836 = vpack.c.b16 %v1584, %v1580
          %v1837 = vpack.c.b16 %v1585, %v1581
          %v1838 = vpack.c.b16 %v1586, %v1582
          %v1839 = vpack.c.b16 %v1587, %v1583
          %v1840 = vpack.c.b16 %v1592, %v1588
          %v1841 = vpack.c.b16 %v1593, %v1589
          %v1842 = vpack.c.b16 %v1594, %v1590
          %v1843 = vpack.c.b16 %v1595, %v1591
          %v1844 = vpack.c.b16 %v1600, %v1596
          %v1845 = vpack.c.b16 %v1601, %v1597
          %v1846 = vpack.c.b16 %v1602, %v1598
          %v1847 = vpack.c.b16 %v1603, %v1599
          %v1848 = vpack.c.b16 %v1608, %v1604
          %v1849 = vpack.c.b16 %v1609, %v1605
          %v1850 = vpack.c.b16 %v1610, %v1606
          %v1851 = vpack.c.b16 %v1611, %v1607
          %v1852 = vpack.c.b16 %v1616, %v1612
          %v1853 = vpack.c.b16 %v1617, %v1613
          %v1854 = vpack.c.b16 %v1618, %v1614
          %v1855 = vpack.c.b16 %v1619, %v1615
          %v1856 = vpack.c.b16 %v1624, %v1620
          %v1857 = vpack.c.b16 %v1625, %v1621
          %v1858 = vpack.c.b16 %v1626, %v1622
          %v1859 = vpack.c.b16 %v1627, %v1623
          %v1860 = vpack.c.b16 %v1632, %v1628
          %v1861 = vpack.c.b16 %v1633, %v1629
          %v1862 = vpack.c.b16 %v1634, %v1630
          %v1863 = vpack.c.b16 %v1635, %v1631
          %v1864 = vpack.c.b16 %v1640, %v1636
          %v1865 = vpack.c.b16 %v1641, %v1637
          %v1866 = vpack.c.b16 %v1642, %v1638
          %v1867 = vpack.c.b16 %v1643, %v1639
          %v1868 = vpack.c.b16 %v1648, %v1644
          %v1869 = vpack.c.b16 %v1649, %v1645
          %v1870 = vpack.c.b16 %v1650, %v1646
          %v1871 = vpack.c.b16 %v1651, %v1647
          %v1872 = vpack.c.b16 %v1656, %v1652
          %v1873 = vpack.c.b16 %v1657, %v1653
          %v1874 = vpack.c.b16 %v1658, %v1654
          %v1875 = vpack.c.b16 %v1659, %v1655
          %v1876 = vpack.c.b16 %v1664, %v1660
          %v1877 = vpack.c.b16 %v1665, %v1661
          %v1878 = vpack.c.b16 %v1666, %v1662
          %v1879 = vpack.c.b16 %v1667, %v1663
          %v1880 = vpack.c.b16 %v1672, %v1668
          %v1881 = vpack.c.b16 %v1673, %v1669
          %v1882 = vpack.c.b16 %v1674, %v1670
          %v1883 = vpack.c.b16 %v1675, %v1671
          %v1884 = vpack.c.b16 %v1680, %v1676
          %v1885 = vpack.c.b16 %v1681, %v1677
          %v1886 = vpack.c.b16 %v1682, %v1678
          %v1887 = vpack.c.b16 %v1683, %v1679
          %v1888 = vpack.c.b16 %v1688, %v1684
          %v1889 = vpack.c.b16 %v1689, %v1685
          %v1890 = vpack.c.b16 %v1690, %v1686
          %v1891 = vpack.c.b16 %v1691, %v1687
          %v1892 = vpack.c.b16 %v1696, %v1692
          %v1893 = vpack.c.b16 %v1697, %v1693
          %v1894 = vpack.c.b16 %v1698, %v1694
          %v1895 = vpack.c.b16 %v1699, %v1695
          %v1896 = vpack.c.b16 %v1704, %v1700
          %v1897 = vpack.c.b16 %v1705, %v1701
          %v1898 = vpack.c.b16 %v1706, %v1702
          %v1899 = vpack.c.b16 %v1707, %v1703
          %v1900 = vpack.c.b16 %v1712, %v1708
          %v1901 = vpack.c.b16 %v1713, %v1709
          %v1902 = vpack.c.b16 %v1714, %v1710
          %v1903 = vpack.c.b16 %v1715, %v1711
          %v1904 = vpack.c.b16 %v1720, %v1716
          %v1905 = vpack.c.b16 %v1721, %v1717
          %v1906 = vpack.c.b16 %v1722, %v1718
          %v1907 = vpack.c.b16 %v1723, %v1719
          %v1908 = vpack.c.b16 %v1728, %v1724
          %v1909 = vpack.c.b16 %v1729, %v1725
          %v1910 = vpack.c.b16 %v1730, %v1726
          %v1911 = vpack.c.b16 %v1731, %v1727
          %v1912 = vpack.c.b16 %v1736, %v1732
          %v1913 = vpack.c.b16 %v1737, %v1733
          %v1914 = vpack.c.b16 %v1738, %v1734
          %v1915 = vpack.c.b16 %v1739, %v1735
          %v1916 = vpack.c.b16 %v1744, %v1740
          %v1917 = vpack.c.b16 %v1745, %v1741
          %v1918 = vpack.c.b16 %v1746, %v1742
          %v1919 = vpack.c.b16 %v1747, %v1743
          %v1920 = vpack.c.b16 %v1752, %v1748
          %v1921 = vpack.c.b16 %v1753, %v1749
          %v1922 = vpack.c.b16 %v1754, %v1750
          %v1923 = vpack.c.b16 %v1755, %v1751
          %v1924 = vpack.c.b16 %v1760, %v1756
          %v1925 = vpack.c.b16 %v1761, %v1757
          %v1926 = vpack.c.b16 %v1762, %v1758
          %v1927 = vpack.c.b16 %v1763, %v1759
          %v1928 = vpack.c.b16 %v1768, %v1764
          %v1929 = vpack.c.b16 %v1769, %v1765
          %v1930 = vpack.c.b16 %v1770, %v1766
          %v1931 = vpack.c.b16 %v1771, %v1767
          %v1932 = vpack.c.b16 %v1776, %v1772
          %v1933 = vpack.c.b16 %v1777, %v1773
          %v1934 = vpack.c.b16 %v1778, %v1774
          %v1935 = vpack.c.b16 %v1779, %v1775
          %v1936 = vpack.c.b16 %v1784, %v1780
          %v1937 = vpack.c.b16 %v1785, %v1781
          %v1938 = vpack.c.b16 %v1786, %v1782
          %v1939 = vpack.c.b16 %v1787, %v1783
          %v1940 = vpack.c.b16 %v1792, %v1788
          %v1941 = vpack.c.b16 %v1793, %v1789
          %v1942 = vpack.c.b16 %v1794, %v1790
          %v1943 = vpack.c.b16 %v1795, %v1791
          %v1944 = vpack.c.b16 %v1800, %v1796
          %v1945 = vpack.c.b16 %v1801, %v1797
          %v1946 = vpack.c.b16 %v1802, %v1798
          %v1947 = vpack.c.b16 %v1803, %v1799
          %v1948 = vpack.c.b16 %v1808, %v1804
          %v1949 = vpack.c.b16 %v1809, %v1805
          %v1950 = vpack.c.b16 %v1810, %v1806
          %v1951 = vpack.c.b16 %v1811, %v1807
          %v1952 = vpack.c.b16 %v1816, %v1812
          %v1953 = vpack.c.b16 %v1817, %v1813
          %v1954 = vpack.c.b16 %v1818, %v1814
          %v1955 = vpack.c.b16 %v1819, %v1815
          %v1956 = vpack.c.b16 %v1824, %v1820
          %v1957 = vpack.c.b16 %v1825, %v1821
          %v1958 = vpack.c.b16 %v1826, %v1822
          %v1959 = vpack.c.b16 %v1827, %v1823
          %v1960 = vpack.c.b16 %v1832, %v1828
          %v1961 = vpack.c.b16 %v1833, %v1829
          %v1962 = vpack.c.b16 %v1834, %v1830
          %v1963 = vpack.c.b16 %v1835, %v1831
          %v2093 = vlaneseq
          %v2094 = vshrl.u32 %v2093, 7
          %v2095 = vsub.s32 0, %v2094
          %v2096 = vrot.slane %v1451, %v2095
          %v2097 = vlaneseq
          %v2098 = vshrl.u32 %v2097, 7
          %v2099 = vsub.s32 1, %v2098
          %v2100 = vrot.slane %v1451, %v2099
          %v2101 = vlaneseq
          %v2102 = vshrl.u32 %v2101, 7
          %v2103 = vsub.s32 2, %v2102
          %v2104 = vrot.slane %v1451, %v2103
          %v2105 = vlaneseq
          %v2106 = vshrl.u32 %v2105, 7
          %v2107 = vsub.s32 3, %v2106
          %v2108 = vrot.slane %v1451, %v2107
          %2113 = vmatprep.subr.bf16.mxu0 %v1837
          %2114 = vmatpush1.bf16.msra.mxu0 %v1836
          %2115 = vmatprep.subr.bf16.mxu0 %v1841
          %2116 = vmatpush1.bf16.msra.mxu0 %v1840
          %2117 = vmatprep.subr.bf16.mxu0 %v1845
          %2118 = vmatpush1.bf16.msra.mxu0 %v1844
          %2119 = vmatprep.subr.bf16.mxu0 %v1849
          %2120 = vmatpush1.bf16.msra.mxu0 %v1848
          %2121 = vmatprep.subr.bf16.mxu0 %v1853
          %2122 = vmatpush1.bf16.msra.mxu0 %v1852
          %2123 = vmatprep.subr.bf16.mxu0 %v1857
          %2124 = vmatpush1.bf16.msra.mxu0 %v1856
          %2125 = vmatprep.subr.bf16.mxu0 %v1861
          %2126 = vmatpush1.bf16.msra.mxu0 %v1860
          %2127 = vmatprep.subr.bf16.mxu0 %v1865
          %2128 = vmatpush1.bf16.msra.mxu0 %v1864
          %2129 = vmatprep.subr.bf16.mxu0 %v1869
          %2130 = vmatpush1.bf16.msra.mxu0 %v1868
          %2131 = vmatprep.subr.bf16.mxu0 %v1873
          %2132 = vmatpush1.bf16.msra.mxu0 %v1872
          %2133 = vmatprep.subr.bf16.mxu0 %v1877
          %2134 = vmatpush1.bf16.msra.mxu0 %v1876
          %2135 = vmatprep.subr.bf16.mxu0 %v1881
          %2136 = vmatpush1.bf16.msra.mxu0 %v1880
          %2137 = vmatprep.subr.bf16.mxu0 %v1885
          %2138 = vmatpush1.bf16.msra.mxu0 %v1884
          %2139 = vmatprep.subr.bf16.mxu0 %v1889
          %2140 = vmatpush1.bf16.msra.mxu0 %v1888
          %2141 = vmatprep.subr.bf16.mxu0 %v1893
          %2142 = vmatpush1.bf16.msra.mxu0 %v1892
          %2143 = vmatprep.subr.bf16.mxu0 %v1897
          %2144 = vmatpush1.bf16.msra.mxu0 %v1896
          %2145 = vmatprep.mubr.bf16.mxu0 %v1320
          %2146 = vmatmul.mubr.bf16.gmra.mrb[0].mxu0 %v1319
          %v2147 = vpop.f32.mrb[0].mxu0
          %v2148 = vadd.f32 %v2096, %v2147
          %v2149 = vpop.f32.mrb[0].mxu0
          %v2150 = vadd.f32 %v2100, %v2149
          %v2151 = vpop.f32.mrb[0].mxu0
          %v2152 = vpop.f32.mrb[0].mxu0
          %2153 = vdwg.mxu0
          %2154 = vmatprep.subr.bf16.mxu0 %v1901
          %2155 = vmatpush1.bf16.msra.mxu0 %v1900
          %2156 = vmatprep.subr.bf16.mxu0 %v1905
          %2157 = vmatpush1.bf16.msra.mxu0 %v1904
          %2158 = vmatprep.subr.bf16.mxu0 %v1909
          %2159 = vmatpush1.bf16.msra.mxu0 %v1908
          %2160 = vmatprep.subr.bf16.mxu0 %v1913
          %2161 = vmatpush1.bf16.msra.mxu0 %v1912
          %2162 = vmatprep.subr.bf16.mxu0 %v1917
          %2163 = vmatpush1.bf16.msra.mxu0 %v1916
          %2164 = vmatprep.subr.bf16.mxu0 %v1921
          %2165 = vmatpush1.bf16.msra.mxu0 %v1920
          %2166 = vmatprep.subr.bf16.mxu0 %v1925
          %2167 = vmatpush1.bf16.msra.mxu0 %v1924
          %2168 = vmatprep.subr.bf16.mxu0 %v1929
          %2169 = vmatpush1.bf16.msra.mxu0 %v1928
          %2170 = vmatprep.subr.bf16.mxu0 %v1933
          %2171 = vmatpush1.bf16.msra.mxu0 %v1932
          %2172 = vmatprep.subr.bf16.mxu0 %v1937
          %2173 = vmatpush1.bf16.msra.mxu0 %v1936
          %2174 = vmatprep.subr.bf16.mxu0 %v1941
          %2175 = vmatpush1.bf16.msra.mxu0 %v1940
          %2176 = vmatprep.subr.bf16.mxu0 %v1945
          %2177 = vmatpush1.bf16.msra.mxu0 %v1944
          %2178 = vmatprep.subr.bf16.mxu0 %v1949
          %2179 = vmatpush1.bf16.msra.mxu0 %v1948
          %2180 = vmatprep.subr.bf16.mxu0 %v1953
          %2181 = vmatpush1.bf16.msra.mxu0 %v1952
          %2182 = vmatprep.subr.bf16.mxu0 %v1957
          %2183 = vmatpush1.bf16.msra.mxu0 %v1956
          %2184 = vmatprep.subr.bf16.mxu0 %v1961
          %2185 = vmatpush1.bf16.msra.mxu0 %v1960
          %2186 = vmatprep.mubr.bf16.mxu0 %v1322
          %2187 = vmatmul.mubr.bf16.gmra.mrb[0].mxu0 %v1321
          %v2188 = vpop.f32.mrb[0].mxu0
          %v2189 = vadd.f32 %v2148, %v2188
          %v2190 = vpop.f32.mrb[0].mxu0
          %v2191 = vadd.f32 %v2150, %v2190
          %v2192 = vpop.f32.mrb[0].mxu0
          %v2193 = vpop.f32.mrb[0].mxu0
          %2194 = vdwg.mxu0
          %2195 = vmatprep.subr.bf16.mxu0 %v1839
          %2196 = vmatpush1.bf16.msra.mxu0 %v1838
          %2197 = vmatprep.subr.bf16.mxu0 %v1843
          %2198 = vmatpush1.bf16.msra.mxu0 %v1842
          %2199 = vmatprep.subr.bf16.mxu0 %v1847
          %2200 = vmatpush1.bf16.msra.mxu0 %v1846
          %2201 = vmatprep.subr.bf16.mxu0 %v1851
          %2202 = vmatpush1.bf16.msra.mxu0 %v1850
          %2203 = vmatprep.subr.bf16.mxu0 %v1855
          %2204 = vmatpush1.bf16.msra.mxu0 %v1854
          %2205 = vmatprep.subr.bf16.mxu0 %v1859
          %2206 = vmatpush1.bf16.msra.mxu0 %v1858
          %2207 = vmatprep.subr.bf16.mxu0 %v1863
          %2208 = vmatpush1.bf16.msra.mxu0 %v1862
          %2209 = vmatprep.subr.bf16.mxu0 %v1867
          %2210 = vmatpush1.bf16.msra.mxu0 %v1866
          %2211 = vmatprep.subr.bf16.mxu0 %v1871
          %2212 = vmatpush1.bf16.msra.mxu0 %v1870
          %2213 = vmatprep.subr.bf16.mxu0 %v1875
          %2214 = vmatpush1.bf16.msra.mxu0 %v1874
          %2215 = vmatprep.subr.bf16.mxu0 %v1879
          %2216 = vmatpush1.bf16.msra.mxu0 %v1878
          %2217 = vmatprep.subr.bf16.mxu0 %v1883
          %2218 = vmatpush1.bf16.msra.mxu0 %v1882
          %2219 = vmatprep.subr.bf16.mxu0 %v1887
          %2220 = vmatpush1.bf16.msra.mxu0 %v1886
          %2221 = vmatprep.subr.bf16.mxu0 %v1891
          %2222 = vmatpush1.bf16.msra.mxu0 %v1890
          %2223 = vmatprep.subr.bf16.mxu0 %v1895
          %2224 = vmatpush1.bf16.msra.mxu0 %v1894
          %2225 = vmatprep.subr.bf16.mxu0 %v1899
          %2226 = vmatpush1.bf16.msra.mxu0 %v1898
          %2227 = vmatprep.mubr.bf16.mxu0 %v1320
          %2228 = vmatmul.mubr.bf16.gmra.mrb[0].mxu0 %v1319
          %v2229 = vpop.f32.mrb[0].mxu0
          %v2230 = vadd.f32 %v2104, %v2229
          %v2231 = vpop.f32.mrb[0].mxu0
          %v2232 = vadd.f32 %v2108, %v2231
          %v2233 = vpop.f32.mrb[0].mxu0
          %v2234 = vpop.f32.mrb[0].mxu0
          %2235 = vdwg.mxu0
          %2236 = vmatprep.subr.bf16.mxu0 %v1903
          %2237 = vmatpush1.bf16.msra.mxu0 %v1902
          %2238 = vmatprep.subr.bf16.mxu0 %v1907
          %2239 = vmatpush1.bf16.msra.mxu0 %v1906
          %2240 = vmatprep.subr.bf16.mxu0 %v1911
          %2241 = vmatpush1.bf16.msra.mxu0 %v1910
          %2242 = vmatprep.subr.bf16.mxu0 %v1915
          %2243 = vmatpush1.bf16.msra.mxu0 %v1914
          %2244 = vmatprep.subr.bf16.mxu0 %v1919
          %2245 = vmatpush1.bf16.msra.mxu0 %v1918
          %2246 = vmatprep.subr.bf16.mxu0 %v1923
          %2247 = vmatpush1.bf16.msra.mxu0 %v1922
          %2248 = vmatprep.subr.bf16.mxu0 %v1927
          %2249 = vmatpush1.bf16.msra.mxu0 %v1926
          %2250 = vmatprep.subr.bf16.mxu0 %v1931
          %2251 = vmatpush1.bf16.msra.mxu0 %v1930
          %2252 = vmatprep.subr.bf16.mxu0 %v1935
          %2253 = vmatpush1.bf16.msra.mxu0 %v1934
          %2254 = vmatprep.subr.bf16.mxu0 %v1939
          %2255 = vmatpush1.bf16.msra.mxu0 %v1938
          %2256 = vmatprep.subr.bf16.mxu0 %v1943
          %2257 = vmatpush1.bf16.msra.mxu0 %v1942
          %2258 = vmatprep.subr.bf16.mxu0 %v1947
          %2259 = vmatpush1.bf16.msra.mxu0 %v1946
          %2260 = vmatprep.subr.bf16.mxu0 %v1951
          %2261 = vmatpush1.bf16.msra.mxu0 %v1950
          %2262 = vmatprep.subr.bf16.mxu0 %v1955
          %2263 = vmatpush1.bf16.msra.mxu0 %v1954
          %2264 = vmatprep.subr.bf16.mxu0 %v1959
          %2265 = vmatpush1.bf16.msra.mxu0 %v1958
          %2266 = vmatprep.subr.bf16.mxu0 %v1963
          %2267 = vmatpush1.bf16.msra.mxu0 %v1962
          %2268 = vmatprep.mubr.bf16.mxu0 %v1322
          %2269 = vmatmul.mubr.bf16.gmra.mrb[0].mxu0 %v1321
          %v2270 = vpop.f32.mrb[0].mxu0
          %v2271 = vadd.f32 %v2230, %v2270
          %v2272 = vpop.f32.mrb[0].mxu0
          %v2273 = vadd.f32 %v2232, %v2272
          %v2274 = vpop.f32.mrb[0].mxu0
          %v2275 = vpop.f32.mrb[0].mxu0
          %2276 = vdwg.mxu0
          %v2277 = vmax.f32 %v2189, 0.0
          %v2278 = vmax.f32 %v2191, 0.0
          %v2279 = vmax.f32 %v2271, 0.0
          %v2280 = vmax.f32 %v2273, 0.0
          %v2281 = vpack.c.bf16 %v2277, %v2277
          %v2282 = vpack.c.bf16 %v2278, %v2278
          %v2283 = vpack.c.bf16 %v2279, %v2279
          %v2284 = vpack.c.bf16 %v2280, %v2280
          %v2285 = vld [vmem:[#allocation9] sm:$0xf]
          %v2286 = vld [vmem:[#allocation9 + $0x4] sm:$0xf]
          %v2287 = vld [vmem:[#allocation9 + $0x8] sm:$0xf]
          %v2288 = vld [vmem:[#allocation9 + $0xc] sm:$0xf]
          %v2289 = vld [vmem:[#allocation9 + $0x10] sm:$0xf]
          %v2290 = vld [vmem:[#allocation9 + $0x14] sm:$0xf]
          %v2291 = vld [vmem:[#allocation9 + $0x18] sm:$0xf]
          %v2292 = vld [vmem:[#allocation9 + $0x1c] sm:$0xf]
          %v2293 = vld [vmem:[#allocation9 + $0x20] sm:$0xf]
          %v2294 = vld [vmem:[#allocation9 + $0x24] sm:$0xf]
          %v2295 = vld [vmem:[#allocation9 + $0x28] sm:$0xf]
          %v2296 = vld [vmem:[#allocation9 + $0x2c] sm:$0xf]
          %v2297 = vld [vmem:[#allocation9 + $0x30] sm:$0xf]
          %v2298 = vld [vmem:[#allocation9 + $0x34] sm:$0xf]
          %v2299 = vld [vmem:[#allocation9 + $0x38] sm:$0xf]
          %v2300 = vld [vmem:[#allocation9 + $0x3c] sm:$0xf]
          %v2301 = vld [vmem:[#allocation9 + $0x40] sm:$0xf]
          %v2302 = vld [vmem:[#allocation9 + $0x44] sm:$0xf]
          %v2303 = vld [vmem:[#allocation9 + $0x48] sm:$0xf]
          %v2304 = vld [vmem:[#allocation9 + $0x4c] sm:$0xf]
          %v2305 = vld [vmem:[#allocation9 + $0x50] sm:$0xf]
          %v2306 = vld [vmem:[#allocation9 + $0x54] sm:$0xf]
          %v2307 = vld [vmem:[#allocation9 + $0x58] sm:$0xf]
          %v2308 = vld [vmem:[#allocation9 + $0x5c] sm:$0xf]
          %v2309 = vld [vmem:[#allocation9 + $0x60] sm:$0xf]
          %v2310 = vld [vmem:[#allocation9 + $0x64] sm:$0xf]
          %v2311 = vld [vmem:[#allocation9 + $0x68] sm:$0xf]
          %v2312 = vld [vmem:[#allocation9 + $0x6c] sm:$0xf]
          %v2313 = vld [vmem:[#allocation9 + $0x70] sm:$0xf]
          %v2314 = vld [vmem:[#allocation9 + $0x74] sm:$0xf]
          %v2315 = vld [vmem:[#allocation9 + $0x78] sm:$0xf]
          %v2316 = vld [vmem:[#allocation9 + $0x7c] sm:$0xf]
          %v2317 = vld [vmem:[#allocation9 + $0x80] sm:$0xf]
          %v2318 = vld [vmem:[#allocation9 + $0x84] sm:$0xf]
          %v2319 = vld [vmem:[#allocation9 + $0x88] sm:$0xf]
          %v2320 = vld [vmem:[#allocation9 + $0x8c] sm:$0xf]
          %v2321 = vld [vmem:[#allocation9 + $0x90] sm:$0xf]
          %v2322 = vld [vmem:[#allocation9 + $0x94] sm:$0xf]
          %v2323 = vld [vmem:[#allocation9 + $0x98] sm:$0xf]
          %v2324 = vld [vmem:[#allocation9 + $0x9c] sm:$0xf]
          %v2325 = vld [vmem:[#allocation9 + $0xa0] sm:$0xf]
          %v2326 = vld [vmem:[#allocation9 + $0xa4] sm:$0xf]
          %v2327 = vld [vmem:[#allocation9 + $0xa8] sm:$0xf]
          %v2328 = vld [vmem:[#allocation9 + $0xac] sm:$0xf]
          %v2329 = vld [vmem:[#allocation9 + $0xb0] sm:$0xf]
          %v2330 = vld [vmem:[#allocation9 + $0xb4] sm:$0xf]
          %v2331 = vld [vmem:[#allocation9 + $0xb8] sm:$0xf]
          %v2332 = vld [vmem:[#allocation9 + $0xbc] sm:$0xf]
          %v2333 = vld [vmem:[#allocation9 + $0xc0] sm:$0xf]
          %v2334 = vld [vmem:[#allocation9 + $0xc4] sm:$0xf]
          %v2335 = vld [vmem:[#allocation9 + $0xc8] sm:$0xf]
          %v2336 = vld [vmem:[#allocation9 + $0xcc] sm:$0xf]
          %v2337 = vld [vmem:[#allocation9 + $0xd0] sm:$0xf]
          %v2338 = vld [vmem:[#allocation9 + $0xd4] sm:$0xf]
          %v2339 = vld [vmem:[#allocation9 + $0xd8] sm:$0xf]
          %v2340 = vld [vmem:[#allocation9 + $0xdc] sm:$0xf]
          %v2341 = vld [vmem:[#allocation9 + $0xe0] sm:$0xf]
          %v2342 = vld [vmem:[#allocation9 + $0xe4] sm:$0xf]
          %v2343 = vld [vmem:[#allocation9 + $0xe8] sm:$0xf]
          %v2344 = vld [vmem:[#allocation9 + $0xec] sm:$0xf]
          %v2345 = vld [vmem:[#allocation9 + $0xf0] sm:$0xf]
          %v2346 = vld [vmem:[#allocation9 + $0xf4] sm:$0xf]
          %v2347 = vld [vmem:[#allocation9 + $0xf8] sm:$0xf]
          %v2348 = vld [vmem:[#allocation9 + $0xfc] sm:$0xf]
          %v2349 = vld [vmem:[%s6] sm:$0x1]
          %v2414 = vunpack.c.l.b16 %v2285
          %v2415 = vunpack.c.l.b16 %v2286
          %v2416 = vunpack.c.l.b16 %v2287
          %v2417 = vunpack.c.l.b16 %v2288
          %v2418 = vunpack.c.l.b16 %v2289
          %v2419 = vunpack.c.l.b16 %v2290
          %v2420 = vunpack.c.l.b16 %v2291
          %v2421 = vunpack.c.l.b16 %v2292
          %v2422 = vunpack.c.l.b16 %v2293
          %v2423 = vunpack.c.l.b16 %v2294
          %v2424 = vunpack.c.l.b16 %v2295
          %v2425 = vunpack.c.l.b16 %v2296
          %v2426 = vunpack.c.l.b16 %v2297
          %v2427 = vunpack.c.l.b16 %v2298
          %v2428 = vunpack.c.l.b16 %v2299
          %v2429 = vunpack.c.l.b16 %v2300
          %v2430 = vunpack.c.l.b16 %v2301
          %v2431 = vunpack.c.l.b16 %v2302
          %v2432 = vunpack.c.l.b16 %v2303
          %v2433 = vunpack.c.l.b16 %v2304
          %v2434 = vunpack.c.l.b16 %v2305
          %v2435 = vunpack.c.l.b16 %v2306
          %v2436 = vunpack.c.l.b16 %v2307
          %v2437 = vunpack.c.l.b16 %v2308
          %v2438 = vunpack.c.l.b16 %v2309
          %v2439 = vunpack.c.l.b16 %v2310
          %v2440 = vunpack.c.l.b16 %v2311
          %v2441 = vunpack.c.l.b16 %v2312
          %v2442 = vunpack.c.l.b16 %v2313
          %v2443 = vunpack.c.l.b16 %v2314
          %v2444 = vunpack.c.l.b16 %v2315
          %v2445 = vunpack.c.l.b16 %v2316
          %v2446 = vunpack.c.l.b16 %v2317
          %v2447 = vunpack.c.l.b16 %v2318
          %v2448 = vunpack.c.l.b16 %v2319
          %v2449 = vunpack.c.l.b16 %v2320
          %v2450 = vunpack.c.l.b16 %v2321
          %v2451 = vunpack.c.l.b16 %v2322
          %v2452 = vunpack.c.l.b16 %v2323
          %v2453 = vunpack.c.l.b16 %v2324
          %v2454 = vunpack.c.l.b16 %v2325
          %v2455 = vunpack.c.l.b16 %v2326
          %v2456 = vunpack.c.l.b16 %v2327
          %v2457 = vunpack.c.l.b16 %v2328
          %v2458 = vunpack.c.l.b16 %v2329
          %v2459 = vunpack.c.l.b16 %v2330
          %v2460 = vunpack.c.l.b16 %v2331
          %v2461 = vunpack.c.l.b16 %v2332
          %v2462 = vunpack.c.l.b16 %v2333
          %v2463 = vunpack.c.l.b16 %v2334
          %v2464 = vunpack.c.l.b16 %v2335
          %v2465 = vunpack.c.l.b16 %v2336
          %v2466 = vunpack.c.l.b16 %v2337
          %v2467 = vunpack.c.l.b16 %v2338
          %v2468 = vunpack.c.l.b16 %v2339
          %v2469 = vunpack.c.l.b16 %v2340
          %v2470 = vunpack.c.l.b16 %v2341
          %v2471 = vunpack.c.l.b16 %v2342
          %v2472 = vunpack.c.l.b16 %v2343
          %v2473 = vunpack.c.l.b16 %v2344
          %v2474 = vunpack.c.l.b16 %v2345
          %v2475 = vunpack.c.l.b16 %v2346
          %v2476 = vunpack.c.l.b16 %v2347
          %v2477 = vunpack.c.l.b16 %v2348
          %v2478 = vpack.c.b16 %v2415, %v2414
          %v2479 = vpack.c.b16 %v2417, %v2416
          %v2480 = vpack.c.b16 %v2419, %v2418
          %v2481 = vpack.c.b16 %v2421, %v2420
          %v2482 = vpack.c.b16 %v2423, %v2422
          %v2483 = vpack.c.b16 %v2425, %v2424
          %v2484 = vpack.c.b16 %v2427, %v2426
          %v2485 = vpack.c.b16 %v2429, %v2428
          %v2486 = vpack.c.b16 %v2431, %v2430
          %v2487 = vpack.c.b16 %v2433, %v2432
          %v2488 = vpack.c.b16 %v2435, %v2434
          %v2489 = vpack.c.b16 %v2437, %v2436
          %v2490 = vpack.c.b16 %v2439, %v2438
          %v2491 = vpack.c.b16 %v2441, %v2440
          %v2492 = vpack.c.b16 %v2443, %v2442
          %v2493 = vpack.c.b16 %v2445, %v2444
          %v2494 = vpack.c.b16 %v2447, %v2446
          %v2495 = vpack.c.b16 %v2449, %v2448
          %v2496 = vpack.c.b16 %v2451, %v2450
          %v2497 = vpack.c.b16 %v2453, %v2452
          %v2498 = vpack.c.b16 %v2455, %v2454
          %v2499 = vpack.c.b16 %v2457, %v2456
          %v2500 = vpack.c.b16 %v2459, %v2458
          %v2501 = vpack.c.b16 %v2461, %v2460
          %v2502 = vpack.c.b16 %v2463, %v2462
          %v2503 = vpack.c.b16 %v2465, %v2464
          %v2504 = vpack.c.b16 %v2467, %v2466
          %v2505 = vpack.c.b16 %v2469, %v2468
          %v2506 = vpack.c.b16 %v2471, %v2470
          %v2507 = vpack.c.b16 %v2473, %v2472
          %v2508 = vpack.c.b16 %v2475, %v2474
          %v2509 = vpack.c.b16 %v2477, %v2476
          %2542 = vmatprep.subr.bf16.mxu0 0
          %2543 = vmatpush1.bf16.msra.mxu0 %v2478
          %2544 = vmatprep.subr.bf16.mxu0 0
          %2545 = vmatpush1.bf16.msra.mxu0 %v2479
          %2546 = vmatprep.subr.bf16.mxu0 0
          %2547 = vmatpush1.bf16.msra.mxu0 %v2480
          %2548 = vmatprep.subr.bf16.mxu0 0
          %2549 = vmatpush1.bf16.msra.mxu0 %v2481
          %2550 = vmatprep.subr.bf16.mxu0 0
          %2551 = vmatpush1.bf16.msra.mxu0 %v2482
          %2552 = vmatprep.subr.bf16.mxu0 0
          %2553 = vmatpush1.bf16.msra.mxu0 %v2483
          %2554 = vmatprep.subr.bf16.mxu0 0
          %2555 = vmatpush1.bf16.msra.mxu0 %v2484
          %2556 = vmatprep.subr.bf16.mxu0 0
          %2557 = vmatpush1.bf16.msra.mxu0 %v2485
          %2558 = vmatprep.subr.bf16.mxu0 0
          %2559 = vmatpush1.bf16.msra.mxu0 %v2486
          %2560 = vmatprep.subr.bf16.mxu0 0
          %2561 = vmatpush1.bf16.msra.mxu0 %v2487
          %2562 = vmatprep.subr.bf16.mxu0 0
          %2563 = vmatpush1.bf16.msra.mxu0 %v2488
          %2564 = vmatprep.subr.bf16.mxu0 0
          %2565 = vmatpush1.bf16.msra.mxu0 %v2489
          %2566 = vmatprep.subr.bf16.mxu0 0
          %2567 = vmatpush1.bf16.msra.mxu0 %v2490
          %2568 = vmatprep.subr.bf16.mxu0 0
          %2569 = vmatpush1.bf16.msra.mxu0 %v2491
          %2570 = vmatprep.subr.bf16.mxu0 0
          %2571 = vmatpush1.bf16.msra.mxu0 %v2492
          %2572 = vmatprep.subr.bf16.mxu0 0
          %2573 = vmatpush1.bf16.msra.mxu0 %v2493
          %2574 = vmatprep.mubr.bf16.mxu0 %v2282
          %2575 = vmatmul.mubr.bf16.gmra.mrb[0].mxu0 %v2281
          %v2576 = vpop.f32.mrb[0].mxu0
          %v2577 = vadd.f32 %v2349, %v2576
          %v2578 = vpop.f32.mrb[0].mxu0
          %v2579 = vpop.f32.mrb[0].mxu0
          %v2580 = vpop.f32.mrb[0].mxu0
          %2581 = vdwg.mxu0
          %2582 = vmatprep.subr.bf16.mxu0 0
          %2583 = vmatpush1.bf16.msra.mxu0 %v2494
          %2584 = vmatprep.subr.bf16.mxu0 0
          %2585 = vmatpush1.bf16.msra.mxu0 %v2495
          %2586 = vmatprep.subr.bf16.mxu0 0
          %2587 = vmatpush1.bf16.msra.mxu0 %v2496
          %2588 = vmatprep.subr.bf16.mxu0 0
          %2589 = vmatpush1.bf16.msra.mxu0 %v2497
          %2590 = vmatprep.subr.bf16.mxu0 0
          %2591 = vmatpush1.bf16.msra.mxu0 %v2498
          %2592 = vmatprep.subr.bf16.mxu0 0
          %2593 = vmatpush1.bf16.msra.mxu0 %v2499
          %2594 = vmatprep.subr.bf16.mxu0 0
          %2595 = vmatpush1.bf16.msra.mxu0 %v2500
          %2596 = vmatprep.subr.bf16.mxu0 0
          %2597 = vmatpush1.bf16.msra.mxu0 %v2501
          %2598 = vmatprep.subr.bf16.mxu0 0
          %2599 = vmatpush1.bf16.msra.mxu0 %v2502
          %2600 = vmatprep.subr.bf16.mxu0 0
          %2601 = vmatpush1.bf16.msra.mxu0 %v2503
          %2602 = vmatprep.subr.bf16.mxu0 0
          %2603 = vmatpush1.bf16.msra.mxu0 %v2504
          %2604 = vmatprep.subr.bf16.mxu0 0
          %2605 = vmatpush1.bf16.msra.mxu0 %v2505
          %2606 = vmatprep.subr.bf16.mxu0 0
          %2607 = vmatpush1.bf16.msra.mxu0 %v2506
          %2608 = vmatprep.subr.bf16.mxu0 0
          %2609 = vmatpush1.bf16.msra.mxu0 %v2507
          %2610 = vmatprep.subr.bf16.mxu0 0
          %2611 = vmatpush1.bf16.msra.mxu0 %v2508
          %2612 = vmatprep.subr.bf16.mxu0 0
          %2613 = vmatpush1.bf16.msra.mxu0 %v2509
          %2614 = vmatprep.mubr.bf16.mxu0 %v2284
          %2615 = vmatmul.mubr.bf16.gmra.mrb[0].mxu0 %v2283
          %v2616 = vpop.f32.mrb[0].mxu0
          %v2617 = vadd.f32 %v2577, %v2616
          %v2618 = vpop.f32.mrb[0].mxu0
          %v2619 = vpop.f32.mrb[0].mxu0
          %v2620 = vpop.f32.mrb[0].mxu0
          %2621 = vdwg.mxu0
          %v2622 = vmax.f32 %v2617, 0.0
          %2623 = vst [vmem:[%s351] sm:$0x1] %v2622
        $region72: #{tpu_custom_call.1} parent=47 // pred_fallthru
          _
        %s2624 = sand.u32 %s200, 1
        %s2625 = scalar_lea.sflag [#allocation5], %s2624
        %s2626 = sand.u32 %s200, 1
        %s2627 = scalar_lea.vmem [#allocation11], %s2626
        // Predicated region
        $region73: #{tpu_custom_call.1} parent=47 // pred_check
          %p2628 = pneg %p210
        $region74: #{tpu_custom_call.1} parent=47 // pred_check_branch
          %2630 = sbr.rel (%p2628) target = $region76
        $region75: #{tpu_custom_call.1} parent=47 // pred_region
          %s2632 = ssub.s32 16, 16
          %2633 = vsyncadd %s2625, %s2632
          %s2634 = smul.addr %s30, 16
          %s2635 = scalar_lea.hbm %s7, %s2634
          %s2637 = sshll.u32 %s2627, 4
          %s2638 = int_to_ptr.vmem [resolvable:$true] %s2637
          %2640 = dma.vmem_to_hbm [thread:$0]  %s2638, 16, %s2635, %s2625
        $region76: #{tpu_custom_call.1} parent=47 // pred_fallthru
          _
      $region48: #{tpu_custom_call.1} parent=5 // pred_fallthru
        _
      %p2641 = scmp.le.s32.totalorder 2, %s21
      // Predicated region
      $region77: #{tpu_custom_call.1} parent=5 // pred_check
        %p2642 = pneg %p2641
      $region78: #{tpu_custom_call.1} parent=5 // pred_check_branch
        %2644 = sbr.rel (%p2642) target = $region80
      $region79: #{tpu_custom_call.1} parent=5 // pred_region
        %s2645 = ssub.s32 %s21, 2
        // Predicated region
        $region81: #{tpu_custom_call.1} parent=79 // pred_check
          %p2646 = pneg %p216
        $region82: #{tpu_custom_call.1} parent=79 // pred_check_branch
          %2648 = sbr.rel (%p2646) target = $region84
        $region83: #{tpu_custom_call.1} parent=79 // pred_region
          %s2649 = sand.u32 %s201, 1
          %s2650 = scalar_lea.sflag [#allocation5], %s2649
          %s2651 = sand.u32 %s201, 1
          %s2652 = scalar_lea.vmem [#allocation11], %s2651
          %2653 = dma.done %s2650, 16
        $region84: #{tpu_custom_call.1} parent=79 // pred_fallthru
          _
      $region80: #{tpu_custom_call.1} parent=5 // pred_fallthru
        _
    $region6: #{tpu_custom_call.1} parent=1 // loop_footer
      %s25 = sadd.s32 1, %s21
    $region7: #{tpu_custom_call.1} parent=1 // loop_footer_branch
      %20 = sbr.rel target = $region3
    $region8: #{tpu_custom_call.1} parent=1 // loop_exit
      _
    %2654 = vsyncpa [#allocation4], 1
    %s2655 = scalar_lea.sflag [#allocation4], 1
    %2656 = vsyncpa %s2655, 1
    %2657 = vsyncpa [#allocation7], 1
    %2658 = vsyncpa [#allocation10], 1
    %2659 = vsyncpa [#allocation5], 1
    %s2660 = scalar_lea.sflag [#allocation5], 1
    %2661 = vsyncpa %s2660, 1

</llo_original>
